<compile_context>
chip_gen: v7x
topology: tpu7x:2x2x1
jax: 0.10.0
libtpu: 0.0.40
codegen_flags: <defaults>
</compile_context>

<pallas_src>
import functools

import numpy as np

import jax
import jax.numpy as jnp
from jax.experimental import pallas as pl
from jax.experimental.pallas import tpu as pltpu


def _round_up(a, b):
    return (a + b - 1) // b * b


def transformer_block_kernel(
    x_ref,                # (L, C, NT)      f32 tokens, native (b, c, S) block
    wqkv_ref,             # (3C, C)         mm dtype, rows = q|k|v
    bqkv_ref,             # (3C, 1)         f32
    hr_ref,               # (L*Hp, L*C)     mm, block-diag head-reduce
    bc_ref,               # (L*C, L*Hp)     mm, block-diag head-broadcast
    wo_ref,               # (C, L*C)        mm, out-proj tiled over keys
    bo_ref,               # (C, 1)          f32
    g1_ref, be1_ref,      # (C, 1), (C, 1)  LayerNorm1 gamma/beta
    w1_ref, b1_ref,       # (FF, C), (FF, 1)
    w2_ref, b2_ref,       # (C, FF), (C, 1)
    g2_ref, be2_ref,      # (C, 1), (C, 1)  LayerNorm2 gamma/beta
    out_ref,              # (L, C, NT)      f32
    *, L, C, Hp, HD, EPS, mm_dtype,
):
    f32 = jnp.float32
    md = mm_dtype
    scale = HD ** -0.5
    inv_c = 1.0 / C

    wqkv = wqkv_ref[...]
    bqkv = bqkv_ref[...]
    hr = hr_ref[...]
    bc = bc_ref[...]
    wo = wo_ref[...]

    # ---- fused QKV projection, one MXU dot per sequence position l ----------
    q, k, v = [], [], []
    for l in range(L):
        xm = x_ref[l].astype(md)                                   # (C, NT)
        qkv = jnp.dot(wqkv, xm, preferred_element_type=f32) + bqkv  # (3C, NT)
        q.append((qkv[0 * C:1 * C] * scale).astype(md))
        k.append(qkv[1 * C:2 * C].astype(md))
        v.append(qkv[2 * C:3 * C].astype(md))
    # All keys' V stacked on the sublane axis (cheap concat, reused for every l).
    v_all = jnp.concatenate(v, axis=0)                             # (L*C, NT)

    for l in range(L):                                             # query position
        # Scores for ALL keys and ALL heads in one MXU dot: the (q_l * k_m)
        # products are stacked along sublanes and reduced per head by the
        # block-diagonal 0/1 matrix hr.
        prod = jnp.concatenate([q[l] * k[m] for m in range(L)], axis=0)   # (L*C, NT)
        s_all = jnp.dot(hr, prod, preferred_element_type=f32)             # (L*Hp, NT)
        s = [s_all[m * Hp:(m + 1) * Hp] for m in range(L)]

        # Softmax over the key axis (m) on fully dense (Hp, NT) vregs.
        smax = s[0]
        for m in range(1, L):
            smax = jnp.maximum(smax, s[m])
        e = [jnp.exp(s[m] - smax) for m in range(L)]
        denom = e[0]
        for m in range(1, L):
            denom = denom + e[m]
        inv = pl.reciprocal(denom, approx=True)
        if mm_dtype == jnp.float32:
            inv = inv * (2.0 - denom * inv)      # Newton step only on the f32 path

        # Head -> channel broadcast (one dot), weight V, and fold the
        # sum-over-keys into the key-tiled out-projection (one more dot).
        p_all = jnp.concatenate([e[m] * inv for m in range(L)],
                                axis=0).astype(md)                 # (L*Hp, NT)
        pb = jnp.dot(bc, p_all, preferred_element_type=f32)        # (L*C, NT)
        pv = pb.astype(md) * v_all                                 # (L*C, NT)
        attn = jnp.dot(wo, pv, preferred_element_type=f32) + bo_ref[...]   # (C, NT)

        # ---- residual + LayerNorm1 (dropout1 = identity, eval mode) ---------
        # Channels are the sublane axis, so the statistics need no lane mask.
        h1 = x_ref[l] + attn
        mu1 = jnp.sum(h1, axis=0, keepdims=True) * inv_c
        c1 = h1 - mu1
        var1 = jnp.sum(c1 * c1, axis=0, keepdims=True) * inv_c
        h1n = c1 * jax.lax.rsqrt(var1 + EPS) * g1_ref[...] + be1_ref[...]

        # ---- FFN: Linear -> ReLU -> Linear -----------------------------------
        ff = jnp.dot(w1_ref[...], h1n.astype(md),
                     preferred_element_type=f32) + b1_ref[...]     # (FF, NT)
        ff = jnp.maximum(ff, 0.0)
        ff = jnp.dot(w2_ref[...], ff.astype(md),
                     preferred_element_type=f32) + b2_ref[...]     # (C, NT)

        # ---- residual + LayerNorm2 (dropout2 = identity, eval mode) ---------
        h2 = h1n + ff
        mu2 = jnp.sum(h2, axis=0, keepdims=True) * inv_c
        c2 = h2 - mu2
        var2 = jnp.sum(c2 * c2, axis=0, keepdims=True) * inv_c
        out_ref[l] = c2 * jax.lax.rsqrt(var2 + EPS) * g2_ref[...] + be2_ref[...]


def make_params(key, dim, ff_dim):
    """Deterministic synthetic parameters, PyTorch-shaped (out_features, in_features)."""
    ks = jax.random.split(key, 12)
    s = 0.05
    p = {
        "w_in":  jax.random.normal(ks[0], (3 * dim, dim), jnp.float32) * s,  # in_proj_weight
        "b_in":  jax.random.normal(ks[1], (3 * dim,),     jnp.float32) * s,
        "w_out": jax.random.normal(ks[2], (dim, dim),     jnp.float32) * s,  # out_proj
        "b_out": jax.random.normal(ks[3], (dim,),         jnp.float32) * s,
        "ln1_g": 1.0 + jax.random.normal(ks[4], (dim,),   jnp.float32) * s,
        "ln1_b": jax.random.normal(ks[5], (dim,),         jnp.float32) * s,
        "w_ff1": jax.random.normal(ks[6], (ff_dim, dim),  jnp.float32) * s,
        "b_ff1": jax.random.normal(ks[7], (ff_dim,),      jnp.float32) * s,
        "w_ff2": jax.random.normal(ks[8], (dim, ff_dim),  jnp.float32) * s,
        "b_ff2": jax.random.normal(ks[9], (dim,),         jnp.float32) * s,
        "ln2_g": 1.0 + jax.random.normal(ks[10], (dim,),  jnp.float32) * s,
        "ln2_b": jax.random.normal(ks[11], (dim,),        jnp.float32) * s,
    }
    return p


def _vmem_limit_bytes():
    """Generation-aware VMEM limit: ~3/4 of capacity, capped at 96 MiB.
    => 96 MiB on v5e/v6e (128 MiB physical), 48 MiB on v7x (64 MiB physical)."""
    default_cap = 64 * 1024 * 1024
    try:
        info = pltpu.get_tpu_info()
        cap = int(getattr(info, "vmem_capacity_bytes", default_cap))
    except Exception:
        cap = default_cap
    return max(32 * 1024 * 1024, min(96 * 1024 * 1024, (cap * 3) // 4))


def transformer_block(x, params, num_heads, *, mm_dtype=jnp.bfloat16, tile_s=None):
    """Fused TransformerBlock forward.  x: (b, c, h, w, z), requires z == 1."""
    b, c, h, w, z = x.shape
    assert z == 1, "final .view(b, c, h, w) requires z == 1"
    S = h * w * z
    C = c
    H = num_heads
    HD = C // H
    FF = params["w_ff1"].shape[0]
    L = b
    f32 = jnp.float32
    md = mm_dtype

    # ---- token tile along S (the in-kernel lane axis) ------------------------
    if tile_s is None:
        if S <= 512:
            tile_s = S                                         # single grid step
        else:
            tile_s = next((t for t in (512, 256, 128) if S % t == 0), 256)
    tile_s = int(min(tile_s, S))
    S_pad = _round_up(S, tile_s)
    if S_pad != tile_s and tile_s % 128 != 0:
        # non-full blocks must be lane-aligned
        tile_s = min(_round_up(tile_s, 128), _round_up(S, 128))
        S_pad = _round_up(S, tile_s)

    # Native (b, c, S) layout: reshape only (bitcast, no HBM traffic); pad the
    # token axis only if the tile does not divide S.
    tokens = x.reshape(b, c, S).astype(f32)
    if S_pad != S:
        tokens = jnp.pad(tokens, ((0, 0), (0, 0), (0, S_pad - S)))

    # ---- parameters (PyTorch (out, in) layout is used AS-IS: activations are
    #      (channels, tokens), so y = W @ x). No channel padding anywhere. -----
    wqkv = params["w_in"].astype(md)                          # (3C, C) fused q|k|v
    bqkv = params["b_in"].reshape(3 * C, 1).astype(f32)
    wo_t = jnp.tile(params["w_out"], (1, L)).astype(md)       # (C, L*C): folds sum over keys
    bo = params["b_out"].reshape(C, 1).astype(f32)
    g1 = params["ln1_g"].reshape(C, 1).astype(f32)
    be1 = params["ln1_b"].reshape(C, 1).astype(f32)
    w1 = params["w_ff1"].astype(md)                           # (FF, C)
    b1 = params["b_ff1"].reshape(FF, 1).astype(f32)
    w2 = params["w_ff2"].astype(md)                           # (C, FF)
    b2 = params["b_ff2"].reshape(C, 1).astype(f32)
    g2 = params["ln2_g"].reshape(C, 1).astype(f32)
    be2 = params["ln2_b"].reshape(C, 1).astype(f32)

    # Block-diagonal 0/1 head matrices (heads padded to a multiple of 8 sublanes;
    # padded head rows/cols are zero so they contribute nothing).
    Hp = _round_up(H, 8)
    hr_np = np.zeros((Hp, C), np.float32)                     # channel -> head reduce
    for ci in range(C):
        hr_np[ci // HD, ci] = 1.0
    eye_l = np.eye(L, dtype=np.float32)
    hr_blk = jnp.asarray(np.kron(eye_l, hr_np), dtype=md)     # (L*Hp, L*C)
    bc_blk = jnp.asarray(np.kron(eye_l, hr_np.T), dtype=md)   # (L*C, L*Hp)

    weights = (wqkv, bqkv, hr_blk, bc_blk, wo_t, bo, g1, be1,
               w1, b1, w2, b2, g2, be2)

    kernel = functools.partial(
        transformer_block_kernel,
        L=L, C=C, Hp=Hp, HD=HD, EPS=1e-5, mm_dtype=mm_dtype,
    )

    def _resident(a):
        # Weights resident in VMEM: same (full) block every grid step, no re-DMA.
        zeros = (0,) * a.ndim
        return pl.BlockSpec(a.shape, lambda i, _z=zeros: _z)

    grid = (S_pad // tile_s,)
    tok_spec = pl.BlockSpec((L, C, tile_s), lambda i: (0, 0, i))

    # Advisory cost estimate so XLA schedules surrounding glue around the kernel.
    tok = L * S_pad
    flops = (2 * tok * C * 3 * C                               # fused QKV
             + 2 * L * S_pad * (L * Hp) * (L * C) * 2          # score-reduce + prob-broadcast
             + 2 * L * S_pad * C * (L * C)                     # out-proj (key-tiled)
             + 2 * tok * C * FF * 2                            # FFN
             + 30 * tok * C)                                   # elementwise / LN
    transcendentals = L * L * Hp * S_pad + L * Hp * S_pad + 2 * tok
    bytes_accessed = (2 * tok * C * 4
                      + sum(int(np.prod(a.shape)) * a.dtype.itemsize for a in weights))
    cost = pl.CostEstimate(flops=int(flops),
                           transcendentals=int(transcendentals),
                           bytes_accessed=int(bytes_accessed))

    out = pl.pallas_call(
        kernel,
        out_shape=jax.ShapeDtypeStruct((L, C, S_pad), jnp.float32),
        grid=grid,
        in_specs=[tok_spec] + [_resident(a) for a in weights],
        out_specs=tok_spec,
        compiler_params=pltpu.CompilerParams(
            dimension_semantics=("parallel",),
            vmem_limit_bytes=_vmem_limit_bytes(),
        ),
        cost_estimate=cost,
    )(tokens, *weights)

    if S_pad != S:
        out = out[:, :, :S]                                    # drop token padding
    return out.reshape(b, c, h, w)                             # already (b, c, S); z == 1


def reference_block(x, params, num_heads):
    """Pure-JAX reference reproducing the exact PyTorch forward (eval mode)."""
    b, c, h, w, z = x.shape
    S = h * w * z
    C = c
    HD = C // num_heads
    xt = jnp.transpose(x.reshape(b, c, S), (0, 2, 1))                  # (L=b, N=S, C)
    L, N = b, S

    qkv = jnp.einsum("lnc,dc->lnd", xt, params["w_in"]) + params["b_in"]
    q, k, v = qkv[..., :C], qkv[..., C:2 * C], qkv[..., 2 * C:]
    q = q * (HD ** -0.5)

    def split_heads(t):  # (L, N, C) -> (N, Hh, L, HD)
        return jnp.transpose(t.reshape(L, N, num_heads, HD), (1, 2, 0, 3))

    qh, kh, vh = split_heads(q), split_heads(k), split_heads(v)
    scores = jnp.einsum("nhld,nhmd->nhlm", qh, kh)
    probs = jax.nn.softmax(scores, axis=-1)
    oh = jnp.einsum("nhlm,nhmd->nhld", probs, vh)                      # (N, Hh, L, HD)
    attn = jnp.transpose(oh, (2, 0, 1, 3)).reshape(L, N, C)
    attn = jnp.einsum("lnc,dc->lnd", attn, params["w_out"]) + params["b_out"]

    def layernorm(t, g, bta):
        mu = jnp.mean(t, axis=-1, keepdims=True)
        var = jnp.mean((t - mu) ** 2, axis=-1, keepdims=True)
        return (t - mu) / jnp.sqrt(var + 1e-5) * g + bta

    h1 = layernorm(xt + attn, params["ln1_g"], params["ln1_b"])
    f = jnp.maximum(jnp.einsum("lnc,fc->lnf", h1, params["w_ff1"]) + params["b_ff1"], 0.0)
    f = jnp.einsum("lnf,cf->lnc", f, params["w_ff2"]) + params["b_ff2"]
    h2 = layernorm(h1 + f, params["ln2_g"], params["ln2_b"])
    return jnp.transpose(h2, (0, 2, 1)).reshape(b, c, h, w)


if __name__ == "__main__":
    key = jax.random.PRNGKey(0)
    kx, kp = jax.random.split(key)

    # dim = channels = 32, heads = 4, ff_dim = 64, spatial 8x8x1 (z must be 1)
    b, dim, hh, ww, zz = 2, 32, 8, 8, 1
    num_heads, ff_dim = 4, 64

    x = jax.random.normal(kx, (b, dim, hh, ww, zz), jnp.float32)
    params = make_params(kp, dim, ff_dim)

    y_ref = reference_block(x, params, num_heads)

    # Full-precision path: strict correctness check against the reference.
    y32 = jax.block_until_ready(
        transformer_block(x, params, num_heads, mm_dtype=jnp.float32))
    assert y32.shape == (b, dim, hh, ww), y32.shape
    assert jnp.allclose(y32, y_ref, atol=1e-3, rtol=1e-3), \
        float(jnp.max(jnp.abs(y32 - y_ref)))

    # bf16-matmul path (default / performance configuration): looser tolerance.
    ybf = jax.block_until_ready(
        transformer_block(x, params, num_heads, mm_dtype=jnp.bfloat16))
    assert ybf.shape == (b, dim, hh, ww), ybf.shape
    assert jnp.allclose(ybf, y_ref, atol=5e-2, rtol=5e-2), \
        float(jnp.max(jnp.abs(ybf - y_ref)))

    print("KERNEL_OK")
</pallas_src>

<mosaic_0001>
module attributes {stable_mosaic.version = 11 : i64} {
  func.func @transformer_block_kernel(%arg0: i32, %arg1: memref<2x32x64xf32, #tpu.memory_space<vmem>>, %arg2: memref<96x32xf32, #tpu.memory_space<vmem>>, %arg3: memref<96x1xf32, #tpu.memory_space<vmem>>, %arg4: memref<16x64xf32, #tpu.memory_space<vmem>>, %arg5: memref<64x16xf32, #tpu.memory_space<vmem>>, %arg6: memref<32x64xf32, #tpu.memory_space<vmem>>, %arg7: memref<32x1xf32, #tpu.memory_space<vmem>>, %arg8: memref<32x1xf32, #tpu.memory_space<vmem>>, %arg9: memref<32x1xf32, #tpu.memory_space<vmem>>, %arg10: memref<64x32xf32, #tpu.memory_space<vmem>>, %arg11: memref<64x1xf32, #tpu.memory_space<vmem>>, %arg12: memref<32x64xf32, #tpu.memory_space<vmem>>, %arg13: memref<32x1xf32, #tpu.memory_space<vmem>>, %arg14: memref<32x1xf32, #tpu.memory_space<vmem>>, %arg15: memref<32x1xf32, #tpu.memory_space<vmem>>, %arg16: memref<2x32x64xf32, #tpu.memory_space<vmem>>) attributes {dimension_semantics = [#tpu.dimension_semantics<parallel>], iteration_bounds = array<i64: 1>, scalar_prefetch = 0 : i64, scratch_operands = 0 : i64, tpu.core_type = #tpu.core_type<tc>, window_params = [{transform_indices = @transform_0, window_bounds = array<i64: 2, 32, 64>}, {pipeline_mode = #tpu.pipeline_mode<synchronous>, transform_indices = @transform_1, window_bounds = array<i64: 96, 32>}, {pipeline_mode = #tpu.pipeline_mode<synchronous>, transform_indices = @transform_2, window_bounds = array<i64: 96, 1>}, {pipeline_mode = #tpu.pipeline_mode<synchronous>, transform_indices = @transform_3, window_bounds = array<i64: 16, 64>}, {pipeline_mode = #tpu.pipeline_mode<synchronous>, transform_indices = @transform_4, window_bounds = array<i64: 64, 16>}, {pipeline_mode = #tpu.pipeline_mode<synchronous>, transform_indices = @transform_5, window_bounds = array<i64: 32, 64>}, {pipeline_mode = #tpu.pipeline_mode<synchronous>, transform_indices = @transform_6, window_bounds = array<i64: 32, 1>}, {pipeline_mode = #tpu.pipeline_mode<synchronous>, transform_indices = @transform_7, window_bounds = array<i64: 32, 1>}, {pipeline_mode = #tpu.pipeline_mode<synchronous>, transform_indices = @transform_8, window_bounds = array<i64: 32, 1>}, {pipeline_mode = #tpu.pipeline_mode<synchronous>, transform_indices = @transform_9, window_bounds = array<i64: 64, 32>}, {pipeline_mode = #tpu.pipeline_mode<synchronous>, transform_indices = @transform_10, window_bounds = array<i64: 64, 1>}, {pipeline_mode = #tpu.pipeline_mode<synchronous>, transform_indices = @transform_11, window_bounds = array<i64: 32, 64>}, {pipeline_mode = #tpu.pipeline_mode<synchronous>, transform_indices = @transform_12, window_bounds = array<i64: 32, 1>}, {pipeline_mode = #tpu.pipeline_mode<synchronous>, transform_indices = @transform_13, window_bounds = array<i64: 32, 1>}, {pipeline_mode = #tpu.pipeline_mode<synchronous>, transform_indices = @transform_14, window_bounds = array<i64: 32, 1>}, {transform_indices = @transform_15, window_bounds = array<i64: 2, 32, 64>}]} {
    %c0 = arith.constant 0 : index
    %c0_0 = arith.constant 0 : index
    %0 = vector.load %arg2[%c0, %c0_0] : memref<96x32xf32, #tpu.memory_space<vmem>>, vector<96x32xf32>
    %c0_1 = arith.constant 0 : index
    %c0_2 = arith.constant 0 : index
    %1 = vector.load %arg3[%c0_1, %c0_2] : memref<96x1xf32, #tpu.memory_space<vmem>>, vector<96x1xf32>
    %c0_3 = arith.constant 0 : index
    %c0_4 = arith.constant 0 : index
    %2 = vector.load %arg4[%c0_3, %c0_4] : memref<16x64xf32, #tpu.memory_space<vmem>>, vector<16x64xf32>
    %c0_5 = arith.constant 0 : index
    %c0_6 = arith.constant 0 : index
    %3 = vector.load %arg5[%c0_5, %c0_6] : memref<64x16xf32, #tpu.memory_space<vmem>>, vector<64x16xf32>
    %c0_7 = arith.constant 0 : index
    %c0_8 = arith.constant 0 : index
    %4 = vector.load %arg6[%c0_7, %c0_8] : memref<32x64xf32, #tpu.memory_space<vmem>>, vector<32x64xf32>
    %c0_9 = arith.constant 0 : index
    %c0_10 = arith.constant 0 : index
    %c0_11 = arith.constant 0 : index
    %5 = vector.load %arg1[%c0_9, %c0_10, %c0_11] : memref<2x32x64xf32, #tpu.memory_space<vmem>>, vector<1x32x64xf32>
    %6 = vector.shape_cast %5 : vector<1x32x64xf32> to vector<32x64xf32>
    %cst = arith.constant dense<0.000000e+00> : vector<96x64xf32>
    %7 = tpu.matmul %0, %6, %cst {dimension_numbers = #tpu.dot_dimension_numbers<[1], [0], [0], [1], [0, 0, 1, 1], [], []>} : vector<96x32xf32>, vector<32x64xf32>, vector<96x64xf32> -> vector<96x64xf32>
    %8 = vector.broadcast %1 : vector<96x1xf32> to vector<96x64xf32>
    %9 = arith.addf %7, %8 : vector<96x64xf32>
    %10 = vector.extract_strided_slice %9 {offsets = [0, 0], sizes = [32, 64], strides = [1, 1]} : vector<96x64xf32> to vector<32x64xf32>
    %cst_12 = arith.constant 0.353553385 : f32
    %11 = vector.broadcast %cst_12 : f32 to vector<32x64xf32>
    %12 = arith.mulf %10, %11 : vector<32x64xf32>
    %13 = vector.extract_strided_slice %9 {offsets = [32, 0], sizes = [32, 64], strides = [1, 1]} : vector<96x64xf32> to vector<32x64xf32>
    %14 = vector.extract_strided_slice %9 {offsets = [64, 0], sizes = [32, 64], strides = [1, 1]} : vector<96x64xf32> to vector<32x64xf32>
    %c1 = arith.constant 1 : index
    %c0_13 = arith.constant 0 : index
    %c0_14 = arith.constant 0 : index
    %15 = vector.load %arg1[%c1, %c0_13, %c0_14] : memref<2x32x64xf32, #tpu.memory_space<vmem>>, vector<1x32x64xf32>
    %16 = vector.shape_cast %15 : vector<1x32x64xf32> to vector<32x64xf32>
    %cst_15 = arith.constant dense<0.000000e+00> : vector<96x64xf32>
    %17 = tpu.matmul %0, %16, %cst_15 {dimension_numbers = #tpu.dot_dimension_numbers<[1], [0], [0], [1], [0, 0, 1, 1], [], []>} : vector<96x32xf32>, vector<32x64xf32>, vector<96x64xf32> -> vector<96x64xf32>
    %18 = vector.broadcast %1 : vector<96x1xf32> to vector<96x64xf32>
    %19 = arith.addf %17, %18 : vector<96x64xf32>
    %20 = vector.extract_strided_slice %19 {offsets = [0, 0], sizes = [32, 64], strides = [1, 1]} : vector<96x64xf32> to vector<32x64xf32>
    %cst_16 = arith.constant 0.353553385 : f32
    %21 = vector.broadcast %cst_16 : f32 to vector<32x64xf32>
    %22 = arith.mulf %20, %21 : vector<32x64xf32>
    %23 = vector.extract_strided_slice %19 {offsets = [32, 0], sizes = [32, 64], strides = [1, 1]} : vector<96x64xf32> to vector<32x64xf32>
    %24 = vector.extract_strided_slice %19 {offsets = [64, 0], sizes = [32, 64], strides = [1, 1]} : vector<96x64xf32> to vector<32x64xf32>
    %25 = tpu.concatenate %14, %24 in 0 : vector<32x64xf32>, vector<32x64xf32> -> vector<64x64xf32>
    %26 = arith.mulf %12, %13 : vector<32x64xf32>
    %27 = arith.mulf %12, %23 : vector<32x64xf32>
    %28 = tpu.concatenate %26, %27 in 0 : vector<32x64xf32>, vector<32x64xf32> -> vector<64x64xf32>
    %cst_17 = arith.constant dense<0.000000e+00> : vector<16x64xf32>
    %29 = tpu.matmul %2, %28, %cst_17 {dimension_numbers = #tpu.dot_dimension_numbers<[1], [0], [0], [1], [0, 0, 1, 1], [], []>} : vector<16x64xf32>, vector<64x64xf32>, vector<16x64xf32> -> vector<16x64xf32>
    %30 = vector.extract_strided_slice %29 {offsets = [0, 0], sizes = [8, 64], strides = [1, 1]} : vector<16x64xf32> to vector<8x64xf32>
    %31 = vector.extract_strided_slice %29 {offsets = [8, 0], sizes = [8, 64], strides = [1, 1]} : vector<16x64xf32> to vector<8x64xf32>
    %32 = arith.maximumf %30, %31 : vector<8x64xf32>
    %33 = arith.subf %30, %32 : vector<8x64xf32>
    %34 = math.exp %33 : vector<8x64xf32>
    %35 = arith.subf %31, %32 : vector<8x64xf32>
    %36 = math.exp %35 : vector<8x64xf32>
    %37 = arith.addf %34, %36 : vector<8x64xf32>
    %38 = tpu.reciprocal %37 {approx = true} : vector<8x64xf32> -> vector<8x64xf32>
    %39 = arith.mulf %37, %38 : vector<8x64xf32>
    %cst_18 = arith.constant 2.000000e+00 : f32
    %40 = vector.broadcast %cst_18 : f32 to vector<8x64xf32>
    %41 = arith.subf %40, %39 : vector<8x64xf32>
    %42 = arith.mulf %38, %41 : vector<8x64xf32>
    %43 = arith.mulf %34, %42 : vector<8x64xf32>
    %44 = arith.mulf %36, %42 : vector<8x64xf32>
    %45 = tpu.concatenate %43, %44 in 0 : vector<8x64xf32>, vector<8x64xf32> -> vector<16x64xf32>
    %cst_19 = arith.constant dense<0.000000e+00> : vector<64x64xf32>
    %46 = tpu.matmul %3, %45, %cst_19 {dimension_numbers = #tpu.dot_dimension_numbers<[1], [0], [0], [1], [0, 0, 1, 1], [], []>} : vector<64x16xf32>, vector<16x64xf32>, vector<64x64xf32> -> vector<64x64xf32>
    %47 = arith.mulf %46, %25 : vector<64x64xf32>
    %cst_20 = arith.constant dense<0.000000e+00> : vector<32x64xf32>
    %48 = tpu.matmul %4, %47, %cst_20 {dimension_numbers = #tpu.dot_dimension_numbers<[1], [0], [0], [1], [0, 0, 1, 1], [], []>} : vector<32x64xf32>, vector<64x64xf32>, vector<32x64xf32> -> vector<32x64xf32>
    %c0_21 = arith.constant 0 : index
    %c0_22 = arith.constant 0 : index
    %49 = vector.load %arg7[%c0_21, %c0_22] : memref<32x1xf32, #tpu.memory_space<vmem>>, vector<32x1xf32>
    %50 = vector.broadcast %49 : vector<32x1xf32> to vector<32x64xf32>
    %51 = arith.addf %48, %50 : vector<32x64xf32>
    %c0_23 = arith.constant 0 : index
    %c0_24 = arith.constant 0 : index
    %c0_25 = arith.constant 0 : index
    %52 = vector.load %arg1[%c0_23, %c0_24, %c0_25] : memref<2x32x64xf32, #tpu.memory_space<vmem>>, vector<1x32x64xf32>
    %53 = vector.shape_cast %52 : vector<1x32x64xf32> to vector<32x64xf32>
    %54 = arith.addf %53, %51 : vector<32x64xf32>
    %cst_26 = arith.constant dense<0.000000e+00> : vector<64xf32>
    %55 = vector.multi_reduction <add>, %54, %cst_26 [0] : vector<32x64xf32> to vector<64xf32>
    %56 = vector.shape_cast %55 : vector<64xf32> to vector<1x64xf32>
    %cst_27 = arith.constant 3.125000e-02 : f32
    %57 = vector.broadcast %cst_27 : f32 to vector<1x64xf32>
    %58 = arith.mulf %56, %57 : vector<1x64xf32>
    %59 = vector.broadcast %58 : vector<1x64xf32> to vector<32x64xf32>
    %60 = arith.subf %54, %59 : vector<32x64xf32>
    %61 = arith.mulf %60, %60 : vector<32x64xf32>
    %cst_28 = arith.constant dense<0.000000e+00> : vector<64xf32>
    %62 = vector.multi_reduction <add>, %61, %cst_28 [0] : vector<32x64xf32> to vector<64xf32>
    %63 = vector.shape_cast %62 : vector<64xf32> to vector<1x64xf32>
    %cst_29 = arith.constant 3.125000e-02 : f32
    %64 = vector.broadcast %cst_29 : f32 to vector<1x64xf32>
    %65 = arith.mulf %63, %64 : vector<1x64xf32>
    %cst_30 = arith.constant 9.99999974E-6 : f32
    %66 = vector.broadcast %cst_30 : f32 to vector<1x64xf32>
    %67 = arith.addf %65, %66 : vector<1x64xf32>
    %68 = math.rsqrt %67 : vector<1x64xf32>
    %69 = vector.broadcast %68 : vector<1x64xf32> to vector<32x64xf32>
    %70 = arith.mulf %60, %69 : vector<32x64xf32>
    %c0_31 = arith.constant 0 : index
    %c0_32 = arith.constant 0 : index
    %71 = vector.load %arg8[%c0_31, %c0_32] : memref<32x1xf32, #tpu.memory_space<vmem>>, vector<32x1xf32>
    %72 = vector.broadcast %71 : vector<32x1xf32> to vector<32x64xf32>
    %73 = arith.mulf %70, %72 : vector<32x64xf32>
    %c0_33 = arith.constant 0 : index
    %c0_34 = arith.constant 0 : index
    %74 = vector.load %arg9[%c0_33, %c0_34] : memref<32x1xf32, #tpu.memory_space<vmem>>, vector<32x1xf32>
    %75 = vector.broadcast %74 : vector<32x1xf32> to vector<32x64xf32>
    %76 = arith.addf %73, %75 : vector<32x64xf32>
    %c0_35 = arith.constant 0 : index
    %c0_36 = arith.constant 0 : index
    %77 = vector.load %arg10[%c0_35, %c0_36] : memref<64x32xf32, #tpu.memory_space<vmem>>, vector<64x32xf32>
    %cst_37 = arith.constant dense<0.000000e+00> : vector<64x64xf32>
    %78 = tpu.matmul %77, %76, %cst_37 {dimension_numbers = #tpu.dot_dimension_numbers<[1], [0], [0], [1], [0, 0, 1, 1], [], []>} : vector<64x32xf32>, vector<32x64xf32>, vector<64x64xf32> -> vector<64x64xf32>
    %c0_38 = arith.constant 0 : index
    %c0_39 = arith.constant 0 : index
    %79 = vector.load %arg11[%c0_38, %c0_39] : memref<64x1xf32, #tpu.memory_space<vmem>>, vector<64x1xf32>
    %80 = vector.broadcast %79 : vector<64x1xf32> to vector<64x64xf32>
    %81 = arith.addf %78, %80 : vector<64x64xf32>
    %cst_40 = arith.constant 0.000000e+00 : f32
    %82 = vector.broadcast %cst_40 : f32 to vector<64x64xf32>
    %83 = arith.maximumf %81, %82 : vector<64x64xf32>
    %c0_41 = arith.constant 0 : index
    %c0_42 = arith.constant 0 : index
    %84 = vector.load %arg12[%c0_41, %c0_42] : memref<32x64xf32, #tpu.memory_space<vmem>>, vector<32x64xf32>
    %cst_43 = arith.constant dense<0.000000e+00> : vector<32x64xf32>
    %85 = tpu.matmul %84, %83, %cst_43 {dimension_numbers = #tpu.dot_dimension_numbers<[1], [0], [0], [1], [0, 0, 1, 1], [], []>} : vector<32x64xf32>, vector<64x64xf32>, vector<32x64xf32> -> vector<32x64xf32>
    %c0_44 = arith.constant 0 : index
    %c0_45 = arith.constant 0 : index
    %86 = vector.load %arg13[%c0_44, %c0_45] : memref<32x1xf32, #tpu.memory_space<vmem>>, vector<32x1xf32>
    %87 = vector.broadcast %86 : vector<32x1xf32> to vector<32x64xf32>
    %88 = arith.addf %85, %87 : vector<32x64xf32>
    %89 = arith.addf %76, %88 : vector<32x64xf32>
    %cst_46 = arith.constant dense<0.000000e+00> : vector<64xf32>
    %90 = vector.multi_reduction <add>, %89, %cst_46 [0] : vector<32x64xf32> to vector<64xf32>
    %91 = vector.shape_cast %90 : vector<64xf32> to vector<1x64xf32>
    %cst_47 = arith.constant 3.125000e-02 : f32
    %92 = vector.broadcast %cst_47 : f32 to vector<1x64xf32>
    %93 = arith.mulf %91, %92 : vector<1x64xf32>
    %94 = vector.broadcast %93 : vector<1x64xf32> to vector<32x64xf32>
    %95 = arith.subf %89, %94 : vector<32x64xf32>
    %96 = arith.mulf %95, %95 : vector<32x64xf32>
    %cst_48 = arith.constant dense<0.000000e+00> : vector<64xf32>
    %97 = vector.multi_reduction <add>, %96, %cst_48 [0] : vector<32x64xf32> to vector<64xf32>
    %98 = vector.shape_cast %97 : vector<64xf32> to vector<1x64xf32>
    %cst_49 = arith.constant 3.125000e-02 : f32
    %99 = vector.broadcast %cst_49 : f32 to vector<1x64xf32>
    %100 = arith.mulf %98, %99 : vector<1x64xf32>
    %cst_50 = arith.constant 9.99999974E-6 : f32
    %101 = vector.broadcast %cst_50 : f32 to vector<1x64xf32>
    %102 = arith.addf %100, %101 : vector<1x64xf32>
    %103 = math.rsqrt %102 : vector<1x64xf32>
    %104 = vector.broadcast %103 : vector<1x64xf32> to vector<32x64xf32>
    %105 = arith.mulf %95, %104 : vector<32x64xf32>
    %c0_51 = arith.constant 0 : index
    %c0_52 = arith.constant 0 : index
    %106 = vector.load %arg14[%c0_51, %c0_52] : memref<32x1xf32, #tpu.memory_space<vmem>>, vector<32x1xf32>
    %107 = vector.broadcast %106 : vector<32x1xf32> to vector<32x64xf32>
    %108 = arith.mulf %105, %107 : vector<32x64xf32>
    %c0_53 = arith.constant 0 : index
    %c0_54 = arith.constant 0 : index
    %109 = vector.load %arg15[%c0_53, %c0_54] : memref<32x1xf32, #tpu.memory_space<vmem>>, vector<32x1xf32>
    %110 = vector.broadcast %109 : vector<32x1xf32> to vector<32x64xf32>
    %111 = arith.addf %108, %110 : vector<32x64xf32>
    %c0_55 = arith.constant 0 : index
    %c0_56 = arith.constant 0 : index
    %c0_57 = arith.constant 0 : index
    %112 = vector.load %arg16[%c0_55, %c0_56, %c0_57] : memref<2x32x64xf32, #tpu.memory_space<vmem>>, vector<1x32x64xf32>
    %113 = vector.shape_cast %112 : vector<1x32x64xf32> to vector<32x64xf32>
    %114 = vector.shape_cast %111 : vector<32x64xf32> to vector<1x32x64xf32>
    tpu.vector_store %arg16[%c0_55, %c0_56, %c0_57], %114 {strides = array<i32>} : memref<2x32x64xf32, #tpu.memory_space<vmem>>, vector<1x32x64xf32>,
    %115 = arith.mulf %22, %13 : vector<32x64xf32>
    %116 = arith.mulf %22, %23 : vector<32x64xf32>
    %117 = tpu.concatenate %115, %116 in 0 : vector<32x64xf32>, vector<32x64xf32> -> vector<64x64xf32>
    %cst_58 = arith.constant dense<0.000000e+00> : vector<16x64xf32>
    %118 = tpu.matmul %2, %117, %cst_58 {dimension_numbers = #tpu.dot_dimension_numbers<[1], [0], [0], [1], [0, 0, 1, 1], [], []>} : vector<16x64xf32>, vector<64x64xf32>, vector<16x64xf32> -> vector<16x64xf32>
    %119 = vector.extract_strided_slice %118 {offsets = [0, 0], sizes = [8, 64], strides = [1, 1]} : vector<16x64xf32> to vector<8x64xf32>
    %120 = vector.extract_strided_slice %118 {offsets = [8, 0], sizes = [8, 64], strides = [1, 1]} : vector<16x64xf32> to vector<8x64xf32>
    %121 = arith.maximumf %119, %120 : vector<8x64xf32>
    %122 = arith.subf %119, %121 : vector<8x64xf32>
    %123 = math.exp %122 : vector<8x64xf32>
    %124 = arith.subf %120, %121 : vector<8x64xf32>
    %125 = math.exp %124 : vector<8x64xf32>
    %126 = arith.addf %123, %125 : vector<8x64xf32>
    %127 = tpu.reciprocal %126 {approx = true} : vector<8x64xf32> -> vector<8x64xf32>
    %128 = arith.mulf %126, %127 : vector<8x64xf32>
    %cst_59 = arith.constant 2.000000e+00 : f32
    %129 = vector.broadcast %cst_59 : f32 to vector<8x64xf32>
    %130 = arith.subf %129, %128 : vector<8x64xf32>
    %131 = arith.mulf %127, %130 : vector<8x64xf32>
    %132 = arith.mulf %123, %131 : vector<8x64xf32>
    %133 = arith.mulf %125, %131 : vector<8x64xf32>
    %134 = tpu.concatenate %132, %133 in 0 : vector<8x64xf32>, vector<8x64xf32> -> vector<16x64xf32>
    %cst_60 = arith.constant dense<0.000000e+00> : vector<64x64xf32>
    %135 = tpu.matmul %3, %134, %cst_60 {dimension_numbers = #tpu.dot_dimension_numbers<[1], [0], [0], [1], [0, 0, 1, 1], [], []>} : vector<64x16xf32>, vector<16x64xf32>, vector<64x64xf32> -> vector<64x64xf32>
    %136 = arith.mulf %135, %25 : vector<64x64xf32>
    %cst_61 = arith.constant dense<0.000000e+00> : vector<32x64xf32>
    %137 = tpu.matmul %4, %136, %cst_61 {dimension_numbers = #tpu.dot_dimension_numbers<[1], [0], [0], [1], [0, 0, 1, 1], [], []>} : vector<32x64xf32>, vector<64x64xf32>, vector<32x64xf32> -> vector<32x64xf32>
    %c0_62 = arith.constant 0 : index
    %c0_63 = arith.constant 0 : index
    %138 = vector.load %arg7[%c0_62, %c0_63] : memref<32x1xf32, #tpu.memory_space<vmem>>, vector<32x1xf32>
    %139 = vector.broadcast %138 : vector<32x1xf32> to vector<32x64xf32>
    %140 = arith.addf %137, %139 : vector<32x64xf32>
    %c1_64 = arith.constant 1 : index
    %c0_65 = arith.constant 0 : index
    %c0_66 = arith.constant 0 : index
    %141 = vector.load %arg1[%c1_64, %c0_65, %c0_66] : memref<2x32x64xf32, #tpu.memory_space<vmem>>, vector<1x32x64xf32>
    %142 = vector.shape_cast %141 : vector<1x32x64xf32> to vector<32x64xf32>
    %143 = arith.addf %142, %140 : vector<32x64xf32>
    %cst_67 = arith.constant dense<0.000000e+00> : vector<64xf32>
    %144 = vector.multi_reduction <add>, %143, %cst_67 [0] : vector<32x64xf32> to vector<64xf32>
    %145 = vector.shape_cast %144 : vector<64xf32> to vector<1x64xf32>
    %cst_68 = arith.constant 3.125000e-02 : f32
    %146 = vector.broadcast %cst_68 : f32 to vector<1x64xf32>
    %147 = arith.mulf %145, %146 : vector<1x64xf32>
    %148 = vector.broadcast %147 : vector<1x64xf32> to vector<32x64xf32>
    %149 = arith.subf %143, %148 : vector<32x64xf32>
    %150 = arith.mulf %149, %149 : vector<32x64xf32>
    %cst_69 = arith.constant dense<0.000000e+00> : vector<64xf32>
    %151 = vector.multi_reduction <add>, %150, %cst_69 [0] : vector<32x64xf32> to vector<64xf32>
    %152 = vector.shape_cast %151 : vector<64xf32> to vector<1x64xf32>
    %cst_70 = arith.constant 3.125000e-02 : f32
    %153 = vector.broadcast %cst_70 : f32 to vector<1x64xf32>
    %154 = arith.mulf %152, %153 : vector<1x64xf32>
    %cst_71 = arith.constant 9.99999974E-6 : f32
    %155 = vector.broadcast %cst_71 : f32 to vector<1x64xf32>
    %156 = arith.addf %154, %155 : vector<1x64xf32>
    %157 = math.rsqrt %156 : vector<1x64xf32>
    %158 = vector.broadcast %157 : vector<1x64xf32> to vector<32x64xf32>
    %159 = arith.mulf %149, %158 : vector<32x64xf32>
    %c0_72 = arith.constant 0 : index
    %c0_73 = arith.constant 0 : index
    %160 = vector.load %arg8[%c0_72, %c0_73] : memref<32x1xf32, #tpu.memory_space<vmem>>, vector<32x1xf32>
    %161 = vector.broadcast %160 : vector<32x1xf32> to vector<32x64xf32>
    %162 = arith.mulf %159, %161 : vector<32x64xf32>
    %c0_74 = arith.constant 0 : index
    %c0_75 = arith.constant 0 : index
    %163 = vector.load %arg9[%c0_74, %c0_75] : memref<32x1xf32, #tpu.memory_space<vmem>>, vector<32x1xf32>
    %164 = vector.broadcast %163 : vector<32x1xf32> to vector<32x64xf32>
    %165 = arith.addf %162, %164 : vector<32x64xf32>
    %c0_76 = arith.constant 0 : index
    %c0_77 = arith.constant 0 : index
    %166 = vector.load %arg10[%c0_76, %c0_77] : memref<64x32xf32, #tpu.memory_space<vmem>>, vector<64x32xf32>
    %cst_78 = arith.constant dense<0.000000e+00> : vector<64x64xf32>
    %167 = tpu.matmul %166, %165, %cst_78 {dimension_numbers = #tpu.dot_dimension_numbers<[1], [0], [0], [1], [0, 0, 1, 1], [], []>} : vector<64x32xf32>, vector<32x64xf32>, vector<64x64xf32> -> vector<64x64xf32>
    %c0_79 = arith.constant 0 : index
    %c0_80 = arith.constant 0 : index
    %168 = vector.load %arg11[%c0_79, %c0_80] : memref<64x1xf32, #tpu.memory_space<vmem>>, vector<64x1xf32>
    %169 = vector.broadcast %168 : vector<64x1xf32> to vector<64x64xf32>
    %170 = arith.addf %167, %169 : vector<64x64xf32>
    %cst_81 = arith.constant 0.000000e+00 : f32
    %171 = vector.broadcast %cst_81 : f32 to vector<64x64xf32>
    %172 = arith.maximumf %170, %171 : vector<64x64xf32>
    %c0_82 = arith.constant 0 : index
    %c0_83 = arith.constant 0 : index
    %173 = vector.load %arg12[%c0_82, %c0_83] : memref<32x64xf32, #tpu.memory_space<vmem>>, vector<32x64xf32>
    %cst_84 = arith.constant dense<0.000000e+00> : vector<32x64xf32>
    %174 = tpu.matmul %173, %172, %cst_84 {dimension_numbers = #tpu.dot_dimension_numbers<[1], [0], [0], [1], [0, 0, 1, 1], [], []>} : vector<32x64xf32>, vector<64x64xf32>, vector<32x64xf32> -> vector<32x64xf32>
    %c0_85 = arith.constant 0 : index
    %c0_86 = arith.constant 0 : index
    %175 = vector.load %arg13[%c0_85, %c0_86] : memref<32x1xf32, #tpu.memory_space<vmem>>, vector<32x1xf32>
    %176 = vector.broadcast %175 : vector<32x1xf32> to vector<32x64xf32>
    %177 = arith.addf %174, %176 : vector<32x64xf32>
    %178 = arith.addf %165, %177 : vector<32x64xf32>
    %cst_87 = arith.constant dense<0.000000e+00> : vector<64xf32>
    %179 = vector.multi_reduction <add>, %178, %cst_87 [0] : vector<32x64xf32> to vector<64xf32>
    %180 = vector.shape_cast %179 : vector<64xf32> to vector<1x64xf32>
    %cst_88 = arith.constant 3.125000e-02 : f32
    %181 = vector.broadcast %cst_88 : f32 to vector<1x64xf32>
    %182 = arith.mulf %180, %181 : vector<1x64xf32>
    %183 = vector.broadcast %182 : vector<1x64xf32> to vector<32x64xf32>
    %184 = arith.subf %178, %183 : vector<32x64xf32>
    %185 = arith.mulf %184, %184 : vector<32x64xf32>
    %cst_89 = arith.constant dense<0.000000e+00> : vector<64xf32>
    %186 = vector.multi_reduction <add>, %185, %cst_89 [0] : vector<32x64xf32> to vector<64xf32>
    %187 = vector.shape_cast %186 : vector<64xf32> to vector<1x64xf32>
    %cst_90 = arith.constant 3.125000e-02 : f32
    %188 = vector.broadcast %cst_90 : f32 to vector<1x64xf32>
    %189 = arith.mulf %187, %188 : vector<1x64xf32>
    %cst_91 = arith.constant 9.99999974E-6 : f32
    %190 = vector.broadcast %cst_91 : f32 to vector<1x64xf32>
    %191 = arith.addf %189, %190 : vector<1x64xf32>
    %192 = math.rsqrt %191 : vector<1x64xf32>
    %193 = vector.broadcast %192 : vector<1x64xf32> to vector<32x64xf32>
    %194 = arith.mulf %184, %193 : vector<32x64xf32>
    %c0_92 = arith.constant 0 : index
    %c0_93 = arith.constant 0 : index
    %195 = vector.load %arg14[%c0_92, %c0_93] : memref<32x1xf32, #tpu.memory_space<vmem>>, vector<32x1xf32>
    %196 = vector.broadcast %195 : vector<32x1xf32> to vector<32x64xf32>
    %197 = arith.mulf %194, %196 : vector<32x64xf32>
    %c0_94 = arith.constant 0 : index
    %c0_95 = arith.constant 0 : index
    %198 = vector.load %arg15[%c0_94, %c0_95] : memref<32x1xf32, #tpu.memory_space<vmem>>, vector<32x1xf32>
    %199 = vector.broadcast %198 : vector<32x1xf32> to vector<32x64xf32>
    %200 = arith.addf %197, %199 : vector<32x64xf32>
    %c1_96 = arith.constant 1 : index
    %c0_97 = arith.constant 0 : index
    %c0_98 = arith.constant 0 : index
    %201 = vector.load %arg16[%c1_96, %c0_97, %c0_98] : memref<2x32x64xf32, #tpu.memory_space<vmem>>, vector<1x32x64xf32>
    %202 = vector.shape_cast %201 : vector<1x32x64xf32> to vector<32x64xf32>
    %203 = vector.shape_cast %200 : vector<32x64xf32> to vector<1x32x64xf32>
    tpu.vector_store %arg16[%c1_96, %c0_97, %c0_98], %203 {strides = array<i32>} : memref<2x32x64xf32, #tpu.memory_space<vmem>>, vector<1x32x64xf32>,
    return
  }
  func.func @transform_0(%arg0: i32) -> (i32, i32, i32) {
    %c0_i32 = arith.constant 0 : i32
    %c0_i32_0 = arith.constant 0 : i32
    %c0_i32_1 = arith.constant 0 : i32
    return %c0_i32, %c0_i32_0, %arg0 : i32, i32, i32
  }
  func.func @transform_1(%arg0: i32) -> (i32, i32) {
    %c0_i32 = arith.constant 0 : i32
    %c0_i32_0 = arith.constant 0 : i32
    %c0_i32_1 = arith.constant 0 : i32
    return %c0_i32, %c0_i32_0 : i32, i32
  }
  func.func @transform_2(%arg0: i32) -> (i32, i32) {
    %c0_i32 = arith.constant 0 : i32
    %c0_i32_0 = arith.constant 0 : i32
    %c0_i32_1 = arith.constant 0 : i32
    return %c0_i32, %c0_i32_0 : i32, i32
  }
  func.func @transform_3(%arg0: i32) -> (i32, i32) {
    %c0_i32 = arith.constant 0 : i32
    %c0_i32_0 = arith.constant 0 : i32
    %c0_i32_1 = arith.constant 0 : i32
    return %c0_i32, %c0_i32_0 : i32, i32
  }
  func.func @transform_4(%arg0: i32) -> (i32, i32) {
    %c0_i32 = arith.constant 0 : i32
    %c0_i32_0 = arith.constant 0 : i32
    %c0_i32_1 = arith.constant 0 : i32
    return %c0_i32, %c0_i32_0 : i32, i32
  }
  func.func @transform_5(%arg0: i32) -> (i32, i32) {
    %c0_i32 = arith.constant 0 : i32
    %c0_i32_0 = arith.constant 0 : i32
    %c0_i32_1 = arith.constant 0 : i32
    return %c0_i32, %c0_i32_0 : i32, i32
  }
  func.func @transform_6(%arg0: i32) -> (i32, i32) {
    %c0_i32 = arith.constant 0 : i32
    %c0_i32_0 = arith.constant 0 : i32
    %c0_i32_1 = arith.constant 0 : i32
    return %c0_i32, %c0_i32_0 : i32, i32
  }
  func.func @transform_7(%arg0: i32) -> (i32, i32) {
    %c0_i32 = arith.constant 0 : i32
    %c0_i32_0 = arith.constant 0 : i32
    %c0_i32_1 = arith.constant 0 : i32
    return %c0_i32, %c0_i32_0 : i32, i32
  }
  func.func @transform_8(%arg0: i32) -> (i32, i32) {
    %c0_i32 = arith.constant 0 : i32
    %c0_i32_0 = arith.constant 0 : i32
    %c0_i32_1 = arith.constant 0 : i32
    return %c0_i32, %c0_i32_0 : i32, i32
  }
  func.func @transform_9(%arg0: i32) -> (i32, i32) {
    %c0_i32 = arith.constant 0 : i32
    %c0_i32_0 = arith.constant 0 : i32
    %c0_i32_1 = arith.constant 0 : i32
    return %c0_i32, %c0_i32_0 : i32, i32
  }
  func.func @transform_10(%arg0: i32) -> (i32, i32) {
    %c0_i32 = arith.constant 0 : i32
    %c0_i32_0 = arith.constant 0 : i32
    %c0_i32_1 = arith.constant 0 : i32
    return %c0_i32, %c0_i32_0 : i32, i32
  }
  func.func @transform_11(%arg0: i32) -> (i32, i32) {
    %c0_i32 = arith.constant 0 : i32
    %c0_i32_0 = arith.constant 0 : i32
    %c0_i32_1 = arith.constant 0 : i32
    return %c0_i32, %c0_i32_0 : i32, i32
  }
  func.func @transform_12(%arg0: i32) -> (i32, i32) {
    %c0_i32 = arith.constant 0 : i32
    %c0_i32_0 = arith.constant 0 : i32
    %c0_i32_1 = arith.constant 0 : i32
    return %c0_i32, %c0_i32_0 : i32, i32
  }
  func.func @transform_13(%arg0: i32) -> (i32, i32) {
    %c0_i32 = arith.constant 0 : i32
    %c0_i32_0 = arith.constant 0 : i32
    %c0_i32_1 = arith.constant 0 : i32
    return %c0_i32, %c0_i32_0 : i32, i32
  }
  func.func @transform_14(%arg0: i32) -> (i32, i32) {
    %c0_i32 = arith.constant 0 : i32
    %c0_i32_0 = arith.constant 0 : i32
    %c0_i32_1 = arith.constant 0 : i32
    return %c0_i32, %c0_i32_0 : i32, i32
  }
  func.func @transform_15(%arg0: i32) -> (i32, i32, i32) {
    %c0_i32 = arith.constant 0 : i32
    %c0_i32_0 = arith.constant 0 : i32
    %c0_i32_1 = arith.constant 0 : i32
    return %c0_i32, %c0_i32_0, %arg0 : i32, i32, i32
  }
}

</mosaic_0001>

<llo_original>
// kernel: tpu_custom_call.1
$region0: #{tpu_custom_call.1}
  #allocation0 [shape = 'u32[]', space=smem, size = 0x4, offset = 0x4, fixed_abs, tag = 'smem constant byte address 0x4 - core index']
  #allocation1 [shape = 'u32[144,128]{1,0:T(1,128)}', space=vmem, size = 0x12000, scoped, tag = 'internal scratch']
  %s0 = inlined_call_operand.vmem [shape: f32[2,32,64], index: 0, kind: input, shape index: {}]
  %s1 = inlined_call_operand.vmem [shape: f32[96,32], index: 1, kind: input, shape index: {}]
  %s2 = inlined_call_operand.vmem [shape: f32[96,1], index: 2, kind: input, shape index: {}]
  %s3 = inlined_call_operand.vmem [shape: f32[16,64], index: 3, kind: input, shape index: {}]
  %s4 = inlined_call_operand.vmem [shape: f32[64,16], index: 4, kind: input, shape index: {}]
  %s5 = inlined_call_operand.vmem [shape: f32[32,64], index: 5, kind: input, shape index: {}]
  %s6 = inlined_call_operand.vmem [shape: f32[32,1], index: 6, kind: input, shape index: {}]
  %s7 = inlined_call_operand.vmem [shape: f32[32,1], index: 7, kind: input, shape index: {}]
  %s8 = inlined_call_operand.vmem [shape: f32[32,1], index: 8, kind: input, shape index: {}]
  %s9 = inlined_call_operand.vmem [shape: f32[64,32], index: 9, kind: input, shape index: {}]
  %s10 = inlined_call_operand.vmem [shape: f32[64,1], index: 10, kind: input, shape index: {}]
  %s11 = inlined_call_operand.vmem [shape: f32[32,64], index: 11, kind: input, shape index: {}]
  %s12 = inlined_call_operand.vmem [shape: f32[32,1], index: 12, kind: input, shape index: {}]
  %s13 = inlined_call_operand.vmem [shape: f32[32,1], index: 13, kind: input, shape index: {}]
  %s14 = inlined_call_operand.vmem [shape: f32[32,1], index: 14, kind: input, shape index: {}]
  %s15 = inlined_call_operand.hbm [shape: f32[2,32,64], index: 15, kind: output, shape index: {}]
  %s16 = sld [smem:[#allocation0]]
  $region70: #{tpu_custom_call.1} parent=0
    _
  %s18 = ssub.s32 1, %s16
  %s19 = scalar_select 0, %s18, %s16
  $region1: #{tpu_custom_call.1} parent=0
    #allocation2 [shape = 'u8[32768]{0}', space=vmem, size = 0x8000, scoped, tag = 'output window, operand 0, single buffered']
    #allocation3 [shape = 's32[1]{0}', space=sflag, size = 0x4, scoped, tag = 'scoped memory for tpu_custom_call.1']
    %20 = vsyncpa [#allocation3], 0
    // Predicated region
    $region2: #{tpu_custom_call.1} parent=1 // pred_check
      _
    $region3: #{tpu_custom_call.1} parent=1 // pred_check_branch
      %22 = sbr.rel (0) target = $region5
    $region4: #{tpu_custom_call.1} parent=1 // pred_region
      _
    $region5: #{tpu_custom_call.1} parent=1 // pred_fallthru
      _
    // Predicated region
    $region6: #{tpu_custom_call.1} parent=1 // pred_check
      _
    $region7: #{tpu_custom_call.1} parent=1 // pred_check_branch
      %24 = sbr.rel (0) target = $region9
    $region8: #{tpu_custom_call.1} parent=1 // pred_region
      _
    $region9: #{tpu_custom_call.1} parent=1 // pred_fallthru
      _
    // Predicated region
    $region10: #{tpu_custom_call.1} parent=1 // pred_check
      _
    $region11: #{tpu_custom_call.1} parent=1 // pred_check_branch
      %26 = sbr.rel (0) target = $region13
    $region12: #{tpu_custom_call.1} parent=1 // pred_region
      _
    $region13: #{tpu_custom_call.1} parent=1 // pred_fallthru
      _
    // Predicated region
    $region14: #{tpu_custom_call.1} parent=1 // pred_check
      _
    $region15: #{tpu_custom_call.1} parent=1 // pred_check_branch
      %28 = sbr.rel (0) target = $region17
    $region16: #{tpu_custom_call.1} parent=1 // pred_region
      _
    $region17: #{tpu_custom_call.1} parent=1 // pred_fallthru
      _
    // Predicated region
    $region18: #{tpu_custom_call.1} parent=1 // pred_check
      _
    $region19: #{tpu_custom_call.1} parent=1 // pred_check_branch
      %30 = sbr.rel (0) target = $region21
    $region20: #{tpu_custom_call.1} parent=1 // pred_region
      _
    $region21: #{tpu_custom_call.1} parent=1 // pred_fallthru
      _
    // Predicated region
    $region22: #{tpu_custom_call.1} parent=1 // pred_check
      _
    $region23: #{tpu_custom_call.1} parent=1 // pred_check_branch
      %32 = sbr.rel (0) target = $region25
    $region24: #{tpu_custom_call.1} parent=1 // pred_region
      _
    $region25: #{tpu_custom_call.1} parent=1 // pred_fallthru
      _
    // Predicated region
    $region26: #{tpu_custom_call.1} parent=1 // pred_check
      _
    $region27: #{tpu_custom_call.1} parent=1 // pred_check_branch
      %34 = sbr.rel (0) target = $region29
    $region28: #{tpu_custom_call.1} parent=1 // pred_region
      _
    $region29: #{tpu_custom_call.1} parent=1 // pred_fallthru
      _
    // Predicated region
    $region30: #{tpu_custom_call.1} parent=1 // pred_check
      _
    $region31: #{tpu_custom_call.1} parent=1 // pred_check_branch
      %36 = sbr.rel (0) target = $region33
    $region32: #{tpu_custom_call.1} parent=1 // pred_region
      _
    $region33: #{tpu_custom_call.1} parent=1 // pred_fallthru
      _
    // Predicated region
    $region34: #{tpu_custom_call.1} parent=1 // pred_check
      _
    $region35: #{tpu_custom_call.1} parent=1 // pred_check_branch
      %38 = sbr.rel (0) target = $region37
    $region36: #{tpu_custom_call.1} parent=1 // pred_region
      _
    $region37: #{tpu_custom_call.1} parent=1 // pred_fallthru
      _
    // Predicated region
    $region38: #{tpu_custom_call.1} parent=1 // pred_check
      _
    $region39: #{tpu_custom_call.1} parent=1 // pred_check_branch
      %40 = sbr.rel (0) target = $region41
    $region40: #{tpu_custom_call.1} parent=1 // pred_region
      _
    $region41: #{tpu_custom_call.1} parent=1 // pred_fallthru
      _
    // Predicated region
    $region42: #{tpu_custom_call.1} parent=1 // pred_check
      _
    $region43: #{tpu_custom_call.1} parent=1 // pred_check_branch
      %42 = sbr.rel (0) target = $region45
    $region44: #{tpu_custom_call.1} parent=1 // pred_region
      _
    $region45: #{tpu_custom_call.1} parent=1 // pred_fallthru
      _
    // Predicated region
    $region46: #{tpu_custom_call.1} parent=1 // pred_check
      _
    $region47: #{tpu_custom_call.1} parent=1 // pred_check_branch
      %44 = sbr.rel (0) target = $region49
    $region48: #{tpu_custom_call.1} parent=1 // pred_region
      _
    $region49: #{tpu_custom_call.1} parent=1 // pred_fallthru
      _
    // Predicated region
    $region50: #{tpu_custom_call.1} parent=1 // pred_check
      _
    $region51: #{tpu_custom_call.1} parent=1 // pred_check_branch
      %46 = sbr.rel (0) target = $region53
    $region52: #{tpu_custom_call.1} parent=1 // pred_region
      _
    $region53: #{tpu_custom_call.1} parent=1 // pred_fallthru
      _
    // Predicated region
    $region54: #{tpu_custom_call.1} parent=1 // pred_check
      _
    $region55: #{tpu_custom_call.1} parent=1 // pred_check_branch
      %48 = sbr.rel (0) target = $region57
    $region56: #{tpu_custom_call.1} parent=1 // pred_region
      _
    $region57: #{tpu_custom_call.1} parent=1 // pred_fallthru
      _
    // Predicated region
    $region58: #{tpu_custom_call.1} parent=1 // pred_check
      _
    $region59: #{tpu_custom_call.1} parent=1 // pred_check_branch
      %50 = sbr.rel (0) target = $region61
    $region60: #{tpu_custom_call.1} parent=1 // pred_region
      _
    $region61: #{tpu_custom_call.1} parent=1 // pred_fallthru
      _
    %v51 = vld [vmem:[%s1] sm:$0xff]
    %v52 = vld [vmem:[%s1 + $0x8] sm:$0xff]
    %v53 = vld [vmem:[%s1 + $0x10] sm:$0xff]
    %v54 = vld [vmem:[%s1 + $0x18] sm:$0xff]
    %v55 = vld [vmem:[%s1 + $0x20] sm:$0xff]
    %v56 = vld [vmem:[%s1 + $0x28] sm:$0xff]
    %v57 = vld [vmem:[%s1 + $0x30] sm:$0xff]
    %v58 = vld [vmem:[%s1 + $0x38] sm:$0xff]
    %v59 = vld [vmem:[%s1 + $0x40] sm:$0xff]
    %v60 = vld [vmem:[%s1 + $0x48] sm:$0xff]
    %v61 = vld [vmem:[%s1 + $0x50] sm:$0xff]
    %v62 = vld [vmem:[%s1 + $0x58] sm:$0xff]
    %v63 = vld [vmem:[%s2] sm:$0xff]
    %v64 = vld [vmem:[%s2 + $0x8] sm:$0xff]
    %v65 = vld [vmem:[%s2 + $0x10] sm:$0xff]
    %v66 = vld [vmem:[%s2 + $0x18] sm:$0xff]
    %v67 = vld [vmem:[%s2 + $0x20] sm:$0xff]
    %v68 = vld [vmem:[%s2 + $0x28] sm:$0xff]
    %v69 = vld [vmem:[%s2 + $0x30] sm:$0xff]
    %v70 = vld [vmem:[%s2 + $0x38] sm:$0xff]
    %v71 = vld [vmem:[%s2 + $0x40] sm:$0xff]
    %v72 = vld [vmem:[%s2 + $0x48] sm:$0xff]
    %v73 = vld [vmem:[%s2 + $0x50] sm:$0xff]
    %v74 = vld [vmem:[%s2 + $0x58] sm:$0xff]
    %v75 = vld [vmem:[%s3] sm:$0xff]
    %v76 = vld [vmem:[%s3 + $0x8] sm:$0xff]
    %v77 = vld [vmem:[%s4] sm:$0xff]
    %v78 = vld [vmem:[%s4 + $0x8] sm:$0xff]
    %v79 = vld [vmem:[%s4 + $0x10] sm:$0xff]
    %v80 = vld [vmem:[%s4 + $0x18] sm:$0xff]
    %v81 = vld [vmem:[%s4 + $0x20] sm:$0xff]
    %v82 = vld [vmem:[%s4 + $0x28] sm:$0xff]
    %v83 = vld [vmem:[%s4 + $0x30] sm:$0xff]
    %v84 = vld [vmem:[%s4 + $0x38] sm:$0xff]
    %v85 = vld [vmem:[%s5] sm:$0xff]
    %v86 = vld [vmem:[%s5 + $0x8] sm:$0xff]
    %v87 = vld [vmem:[%s5 + $0x10] sm:$0xff]
    %v88 = vld [vmem:[%s5 + $0x18] sm:$0xff]
    %v89 = vld [vmem:[%s0] sm:$0xff]
    %v90 = vld [vmem:[%s0 + $0x8] sm:$0xff]
    %v91 = vld [vmem:[%s0 + $0x10] sm:$0xff]
    %v92 = vld [vmem:[%s0 + $0x18] sm:$0xff]
    %94 = vset.pattern.permute.xlu0 0
    %95 = vperm.xlu0 %94, %v63
    %v96 = vpop.permute.xlu0 %95
    %99 = vset.pattern.permute.xlu0 0
    %100 = vperm.xlu0 %99, %v64
    %v101 = vpop.permute.xlu0 %100
    %104 = vset.pattern.permute.xlu0 0
    %105 = vperm.xlu0 %104, %v65
    %v106 = vpop.permute.xlu0 %105
    %109 = vset.pattern.permute.xlu0 0
    %110 = vperm.xlu0 %109, %v66
    %v111 = vpop.permute.xlu0 %110
    %114 = vset.pattern.permute.xlu0 0
    %115 = vperm.xlu0 %114, %v67
    %v116 = vpop.permute.xlu0 %115
    %119 = vset.pattern.permute.xlu0 0
    %120 = vperm.xlu0 %119, %v68
    %v121 = vpop.permute.xlu0 %120
    %124 = vset.pattern.permute.xlu0 0
    %125 = vperm.xlu0 %124, %v69
    %v126 = vpop.permute.xlu0 %125
    %129 = vset.pattern.permute.xlu0 0
    %130 = vperm.xlu0 %129, %v70
    %v131 = vpop.permute.xlu0 %130
    %134 = vset.pattern.permute.xlu0 0
    %135 = vperm.xlu0 %134, %v71
    %v136 = vpop.permute.xlu0 %135
    %139 = vset.pattern.permute.xlu0 0
    %140 = vperm.xlu0 %139, %v72
    %v141 = vpop.permute.xlu0 %140
    %144 = vset.pattern.permute.xlu0 0
    %145 = vperm.xlu0 %144, %v73
    %v146 = vpop.permute.xlu0 %145
    %149 = vset.pattern.permute.xlu0 0
    %150 = vperm.xlu0 %149, %v74
    %v151 = vpop.permute.xlu0 %150
    %vm153 = vcmask 261120
    %v155 = vsel %vm153, %v51, 0
    %v158 = vsel %vm153, %v52, 0
    %v161 = vsel %vm153, %v53, 0
    %v164 = vsel %vm153, %v54, 0
    %v167 = vsel %vm153, %v55, 0
    %v170 = vsel %vm153, %v56, 0
    %v173 = vsel %vm153, %v57, 0
    %v176 = vsel %vm153, %v58, 0
    %v179 = vsel %vm153, %v59, 0
    %v182 = vsel %vm153, %v60, 0
    %v185 = vsel %vm153, %v61, 0
    %v188 = vsel %vm153, %v62, 0
    %190 = vmatprep.subr.mxu0 0.0
    %191 = vmatpush1.msra.mxu0 %v89
    %192 = vmatprep.subr.mxu0 0.0
    %193 = vmatpush1.msra.mxu0 %v90
    %194 = vmatprep.subr.mxu0 0.0
    %195 = vmatpush1.msra.mxu0 %v91
    %196 = vmatprep.subr.mxu0 0.0
    %197 = vmatpush1.msra.mxu0 %v92
    %198 = vmatprep.subr.mxu0 0.0
    %199 = vmatpush1.msra.mxu0 0.0
    %200 = vmatprep.subr.mxu0 0.0
    %201 = vmatpush1.msra.mxu0 0.0
    %202 = vmatprep.subr.mxu0 0.0
    %203 = vmatpush1.msra.mxu0 0.0
    %204 = vmatprep.subr.mxu0 0.0
    %205 = vmatpush1.msra.mxu0 0.0
    %206 = vmatprep.subr.mxu0 0.0
    %207 = vmatpush1.msra.mxu0 0.0
    %208 = vmatprep.subr.mxu0 0.0
    %209 = vmatpush1.msra.mxu0 0.0
    %210 = vmatprep.subr.mxu0 0.0
    %211 = vmatpush1.msra.mxu0 0.0
    %212 = vmatprep.subr.mxu0 0.0
    %213 = vmatpush1.msra.mxu0 0.0
    %214 = vmatprep.subr.mxu0 0.0
    %215 = vmatpush1.msra.mxu0 0.0
    %216 = vmatprep.subr.mxu0 0.0
    %217 = vmatpush1.msra.mxu0 0.0
    %218 = vmatprep.subr.mxu0 0.0
    %219 = vmatpush1.msra.mxu0 0.0
    %220 = vmatprep.subr.mxu0 0.0
    %221 = vmatpush1.msra.mxu0 0.0
    %222 = vmatprep.subr.mxu0 0.0
    %223 = vmatpush1.msra.mxu0 0.0
    %224 = vmatprep.subr.mxu0 0.0
    %225 = vmatpush1.msra.mxu0 0.0
    %226 = vmatprep.subr.mxu0 0.0
    %227 = vmatpush1.msra.mxu0 0.0
    %228 = vmatprep.subr.mxu0 0.0
    %229 = vmatpush1.msra.mxu0 0.0
    %230 = vmatprep.subr.mxu0 0.0
    %231 = vmatpush1.msra.mxu0 0.0
    %232 = vmatprep.subr.mxu0 0.0
    %233 = vmatpush1.msra.mxu0 0.0
    %234 = vmatprep.subr.mxu0 0.0
    %235 = vmatpush1.msra.mxu0 0.0
    %236 = vmatprep.subr.mxu0 0.0
    %237 = vmatpush1.msra.mxu0 0.0
    %238 = vmatprep.subr.mxu0 0.0
    %239 = vmatpush1.msra.mxu0 0.0
    %240 = vmatprep.subr.mxu0 0.0
    %241 = vmatpush1.msra.mxu0 0.0
    %242 = vmatprep.subr.mxu0 0.0
    %243 = vmatpush1.msra.mxu0 0.0
    %244 = vmatprep.subr.mxu0 0.0
    %245 = vmatpush1.msra.mxu0 0.0
    %246 = vmatprep.subr.mxu0 0.0
    %247 = vmatpush1.msra.mxu0 0.0
    %248 = vmatprep.subr.mxu0 0.0
    %249 = vmatpush1.msra.mxu0 0.0
    %250 = vmatprep.subr.mxu0 0.0
    %251 = vmatpush1.msra.mxu0 0.0
    %252 = vmatprep.subr.mxu0 0.0
    %253 = vmatpush1.msra.mxu0 0.0
    %254 = vmatprep.mubr.f32.mxu0 0.0
    %255 = vmatmul.mubr.f32.gmra.mrb[0].mxu0 %v155
    %v256 = vpop.f32.mrb[0].mxu0
    %v257 = vadd.f32 %v96, %v256
    %v258 = vpop.f32.mrb[0].mxu0
    %259 = vmatprep.mubr.f32.mxu0 0.0
    %260 = vmatmul.mubr.f32.gmra.mrb[0].mxu0 %v158
    %v261 = vpop.f32.mrb[0].mxu0
    %v262 = vadd.f32 %v101, %v261
    %v263 = vpop.f32.mrb[0].mxu0
    %264 = vmatprep.mubr.f32.mxu0 0.0
    %265 = vmatmul.mubr.f32.gmra.mrb[0].mxu0 %v161
    %v266 = vpop.f32.mrb[0].mxu0
    %v267 = vadd.f32 %v106, %v266
    %v268 = vpop.f32.mrb[0].mxu0
    %269 = vmatprep.mubr.f32.mxu0 0.0
    %270 = vmatmul.mubr.f32.gmra.mrb[0].mxu0 %v164
    %v271 = vpop.f32.mrb[0].mxu0
    %v272 = vadd.f32 %v111, %v271
    %v273 = vpop.f32.mrb[0].mxu0
    %274 = vmatprep.mubr.f32.mxu0 0.0
    %275 = vmatmul.mubr.f32.gmra.mrb[0].mxu0 %v167
    %v276 = vpop.f32.mrb[0].mxu0
    %v277 = vadd.f32 %v116, %v276
    %v278 = vpop.f32.mrb[0].mxu0
    %279 = vmatprep.mubr.f32.mxu0 0.0
    %280 = vmatmul.mubr.f32.gmra.mrb[0].mxu0 %v170
    %v281 = vpop.f32.mrb[0].mxu0
    %v282 = vadd.f32 %v121, %v281
    %v283 = vpop.f32.mrb[0].mxu0
    %284 = vmatprep.mubr.f32.mxu0 0.0
    %285 = vmatmul.mubr.f32.gmra.mrb[0].mxu0 %v173
    %v286 = vpop.f32.mrb[0].mxu0
    %v287 = vadd.f32 %v126, %v286
    %v288 = vpop.f32.mrb[0].mxu0
    %289 = vmatprep.mubr.f32.mxu0 0.0
    %290 = vmatmul.mubr.f32.gmra.mrb[0].mxu0 %v176
    %v291 = vpop.f32.mrb[0].mxu0
    %v292 = vadd.f32 %v131, %v291
    %v293 = vpop.f32.mrb[0].mxu0
    %294 = vmatprep.mubr.f32.mxu0 0.0
    %295 = vmatmul.mubr.f32.gmra.mrb[0].mxu0 %v179
    %v296 = vpop.f32.mrb[0].mxu0
    %v297 = vadd.f32 %v136, %v296
    %v298 = vpop.f32.mrb[0].mxu0
    %299 = vmatprep.mubr.f32.mxu0 0.0
    %300 = vmatmul.mubr.f32.gmra.mrb[0].mxu0 %v182
    %v301 = vpop.f32.mrb[0].mxu0
    %v302 = vadd.f32 %v141, %v301
    %v303 = vpop.f32.mrb[0].mxu0
    %304 = vmatprep.mubr.f32.mxu0 0.0
    %305 = vmatmul.mubr.f32.gmra.mrb[0].mxu0 %v185
    %v306 = vpop.f32.mrb[0].mxu0
    %v307 = vadd.f32 %v146, %v306
    %v308 = vpop.f32.mrb[0].mxu0
    %309 = vmatprep.mubr.f32.mxu0 0.0
    %310 = vmatmul.mubr.f32.gmra.mrb[0].mxu0 %v188
    %v311 = vpop.f32.mrb[0].mxu0
    %v312 = vadd.f32 %v151, %v311
    %v313 = vpop.f32.mrb[0].mxu0
    %314 = vdwg.mxu0
    %v315 = vmul.f32 %v257, 0.35355338
    %v316 = vmul.f32 %v262, 0.35355338
    %v317 = vmul.f32 %v267, 0.35355338
    %v318 = vmul.f32 %v272, 0.35355338
    %s319 = scalar_lea.vmem %s0, 32
    %v320 = vld [vmem:[%s319] sm:$0xff]
    %v321 = vld [vmem:[%s319 + $0x8] sm:$0xff]
    %v322 = vld [vmem:[%s319 + $0x10] sm:$0xff]
    %v323 = vld [vmem:[%s319 + $0x18] sm:$0xff]
    %324 = vmatprep.subr.mxu0 0.0
    %325 = vmatpush1.msra.mxu0 %v320
    %326 = vmatprep.subr.mxu0 0.0
    %327 = vmatpush1.msra.mxu0 %v321
    %328 = vmatprep.subr.mxu0 0.0
    %329 = vmatpush1.msra.mxu0 %v322
    %330 = vmatprep.subr.mxu0 0.0
    %331 = vmatpush1.msra.mxu0 %v323
    %332 = vmatprep.subr.mxu0 0.0
    %333 = vmatpush1.msra.mxu0 0.0
    %334 = vmatprep.subr.mxu0 0.0
    %335 = vmatpush1.msra.mxu0 0.0
    %336 = vmatprep.subr.mxu0 0.0
    %337 = vmatpush1.msra.mxu0 0.0
    %338 = vmatprep.subr.mxu0 0.0
    %339 = vmatpush1.msra.mxu0 0.0
    %340 = vmatprep.subr.mxu0 0.0
    %341 = vmatpush1.msra.mxu0 0.0
    %342 = vmatprep.subr.mxu0 0.0
    %343 = vmatpush1.msra.mxu0 0.0
    %344 = vmatprep.subr.mxu0 0.0
    %345 = vmatpush1.msra.mxu0 0.0
    %346 = vmatprep.subr.mxu0 0.0
    %347 = vmatpush1.msra.mxu0 0.0
    %348 = vmatprep.subr.mxu0 0.0
    %349 = vmatpush1.msra.mxu0 0.0
    %350 = vmatprep.subr.mxu0 0.0
    %351 = vmatpush1.msra.mxu0 0.0
    %352 = vmatprep.subr.mxu0 0.0
    %353 = vmatpush1.msra.mxu0 0.0
    %354 = vmatprep.subr.mxu0 0.0
    %355 = vmatpush1.msra.mxu0 0.0
    %356 = vmatprep.subr.mxu0 0.0
    %357 = vmatpush1.msra.mxu0 0.0
    %358 = vmatprep.subr.mxu0 0.0
    %359 = vmatpush1.msra.mxu0 0.0
    %360 = vmatprep.subr.mxu0 0.0
    %361 = vmatpush1.msra.mxu0 0.0
    %362 = vmatprep.subr.mxu0 0.0
    %363 = vmatpush1.msra.mxu0 0.0
    %364 = vmatprep.subr.mxu0 0.0
    %365 = vmatpush1.msra.mxu0 0.0
    %366 = vmatprep.subr.mxu0 0.0
    %367 = vmatpush1.msra.mxu0 0.0
    %368 = vmatprep.subr.mxu0 0.0
    %369 = vmatpush1.msra.mxu0 0.0
    %370 = vmatprep.subr.mxu0 0.0
    %371 = vmatpush1.msra.mxu0 0.0
    %372 = vmatprep.subr.mxu0 0.0
    %373 = vmatpush1.msra.mxu0 0.0
    %374 = vmatprep.subr.mxu0 0.0
    %375 = vmatpush1.msra.mxu0 0.0
    %376 = vmatprep.subr.mxu0 0.0
    %377 = vmatpush1.msra.mxu0 0.0
    %378 = vmatprep.subr.mxu0 0.0
    %379 = vmatpush1.msra.mxu0 0.0
    %380 = vmatprep.subr.mxu0 0.0
    %381 = vmatpush1.msra.mxu0 0.0
    %382 = vmatprep.subr.mxu0 0.0
    %383 = vmatpush1.msra.mxu0 0.0
    %384 = vmatprep.subr.mxu0 0.0
    %385 = vmatpush1.msra.mxu0 0.0
    %386 = vmatprep.subr.mxu0 0.0
    %387 = vmatpush1.msra.mxu0 0.0
    %388 = vmatprep.mubr.f32.mxu0 0.0
    %389 = vmatmul.mubr.f32.gmra.mrb[0].mxu0 %v155
    %v390 = vpop.f32.mrb[0].mxu0
    %v391 = vadd.f32 %v96, %v390
    %v392 = vpop.f32.mrb[0].mxu0
    %393 = vmatprep.mubr.f32.mxu0 0.0
    %394 = vmatmul.mubr.f32.gmra.mrb[0].mxu0 %v158
    %v395 = vpop.f32.mrb[0].mxu0
    %v396 = vadd.f32 %v101, %v395
    %v397 = vpop.f32.mrb[0].mxu0
    %398 = vmatprep.mubr.f32.mxu0 0.0
    %399 = vmatmul.mubr.f32.gmra.mrb[0].mxu0 %v161
    %v400 = vpop.f32.mrb[0].mxu0
    %v401 = vadd.f32 %v106, %v400
    %v402 = vpop.f32.mrb[0].mxu0
    %403 = vmatprep.mubr.f32.mxu0 0.0
    %404 = vmatmul.mubr.f32.gmra.mrb[0].mxu0 %v164
    %v405 = vpop.f32.mrb[0].mxu0
    %v406 = vadd.f32 %v111, %v405
    %v407 = vpop.f32.mrb[0].mxu0
    %408 = vmatprep.mubr.f32.mxu0 0.0
    %409 = vmatmul.mubr.f32.gmra.mrb[0].mxu0 %v167
    %v410 = vpop.f32.mrb[0].mxu0
    %v411 = vadd.f32 %v116, %v410
    %v412 = vpop.f32.mrb[0].mxu0
    %413 = vmatprep.mubr.f32.mxu0 0.0
    %414 = vmatmul.mubr.f32.gmra.mrb[0].mxu0 %v170
    %v415 = vpop.f32.mrb[0].mxu0
    %v416 = vadd.f32 %v121, %v415
    %v417 = vpop.f32.mrb[0].mxu0
    %418 = vmatprep.mubr.f32.mxu0 0.0
    %419 = vmatmul.mubr.f32.gmra.mrb[0].mxu0 %v173
    %v420 = vpop.f32.mrb[0].mxu0
    %v421 = vadd.f32 %v126, %v420
    %v422 = vpop.f32.mrb[0].mxu0
    %423 = vmatprep.mubr.f32.mxu0 0.0
    %424 = vmatmul.mubr.f32.gmra.mrb[0].mxu0 %v176
    %v425 = vpop.f32.mrb[0].mxu0
    %v426 = vadd.f32 %v131, %v425
    %v427 = vpop.f32.mrb[0].mxu0
    %428 = vmatprep.mubr.f32.mxu0 0.0
    %429 = vmatmul.mubr.f32.gmra.mrb[0].mxu0 %v179
    %v430 = vpop.f32.mrb[0].mxu0
    %v431 = vadd.f32 %v136, %v430
    %v432 = vpop.f32.mrb[0].mxu0
    %433 = vmatprep.mubr.f32.mxu0 0.0
    %434 = vmatmul.mubr.f32.gmra.mrb[0].mxu0 %v182
    %v435 = vpop.f32.mrb[0].mxu0
    %v436 = vadd.f32 %v141, %v435
    %v437 = vpop.f32.mrb[0].mxu0
    %438 = vmatprep.mubr.f32.mxu0 0.0
    %439 = vmatmul.mubr.f32.gmra.mrb[0].mxu0 %v185
    %v440 = vpop.f32.mrb[0].mxu0
    %v441 = vadd.f32 %v146, %v440
    %v442 = vpop.f32.mrb[0].mxu0
    %443 = vmatprep.mubr.f32.mxu0 0.0
    %444 = vmatmul.mubr.f32.gmra.mrb[0].mxu0 %v188
    %v445 = vpop.f32.mrb[0].mxu0
    %v446 = vadd.f32 %v151, %v445
    %v447 = vpop.f32.mrb[0].mxu0
    %448 = vdwg.mxu0
    %v449 = vmul.f32 %v391, 0.35355338
    %v450 = vmul.f32 %v396, 0.35355338
    %v451 = vmul.f32 %v401, 0.35355338
    %v452 = vmul.f32 %v406, 0.35355338
    %v453 = vmul.f32 %v315, %v277
    %v454 = vmul.f32 %v316, %v282
    %v455 = vmul.f32 %v317, %v287
    %v456 = vmul.f32 %v318, %v292
    %v457 = vmul.f32 %v315, %v411
    %v458 = vmul.f32 %v316, %v416
    %v459 = vmul.f32 %v317, %v421
    %v460 = vmul.f32 %v318, %v426
    %vm461 = vcmask 523264
    %v463 = vsel %vm461, %v75, 0
    %v466 = vsel %vm461, %v76, 0
    %468 = vmatprep.subr.mxu0 0.0
    %469 = vmatpush1.msra.mxu0 %v453
    %470 = vmatprep.subr.mxu0 0.0
    %471 = vmatpush1.msra.mxu0 %v454
    %472 = vmatprep.subr.mxu0 0.0
    %473 = vmatpush1.msra.mxu0 %v455
    %474 = vmatprep.subr.mxu0 0.0
    %475 = vmatpush1.msra.mxu0 %v456
    %476 = vmatprep.subr.mxu0 0.0
    %477 = vmatpush1.msra.mxu0 %v457
    %478 = vmatprep.subr.mxu0 0.0
    %479 = vmatpush1.msra.mxu0 %v458
    %480 = vmatprep.subr.mxu0 0.0
    %481 = vmatpush1.msra.mxu0 %v459
    %482 = vmatprep.subr.mxu0 0.0
    %483 = vmatpush1.msra.mxu0 %v460
    %484 = vmatprep.subr.mxu0 0.0
    %485 = vmatpush1.msra.mxu0 0.0
    %486 = vmatprep.subr.mxu0 0.0
    %487 = vmatpush1.msra.mxu0 0.0
    %488 = vmatprep.subr.mxu0 0.0
    %489 = vmatpush1.msra.mxu0 0.0
    %490 = vmatprep.subr.mxu0 0.0
    %491 = vmatpush1.msra.mxu0 0.0
    %492 = vmatprep.subr.mxu0 0.0
    %493 = vmatpush1.msra.mxu0 0.0
    %494 = vmatprep.subr.mxu0 0.0
    %495 = vmatpush1.msra.mxu0 0.0
    %496 = vmatprep.subr.mxu0 0.0
    %497 = vmatpush1.msra.mxu0 0.0
    %498 = vmatprep.subr.mxu0 0.0
    %499 = vmatpush1.msra.mxu0 0.0
    %500 = vmatprep.subr.mxu0 0.0
    %501 = vmatpush1.msra.mxu0 0.0
    %502 = vmatprep.subr.mxu0 0.0
    %503 = vmatpush1.msra.mxu0 0.0
    %504 = vmatprep.subr.mxu0 0.0
    %505 = vmatpush1.msra.mxu0 0.0
    %506 = vmatprep.subr.mxu0 0.0
    %507 = vmatpush1.msra.mxu0 0.0
    %508 = vmatprep.subr.mxu0 0.0
    %509 = vmatpush1.msra.mxu0 0.0
    %510 = vmatprep.subr.mxu0 0.0
    %511 = vmatpush1.msra.mxu0 0.0
    %512 = vmatprep.subr.mxu0 0.0
    %513 = vmatpush1.msra.mxu0 0.0
    %514 = vmatprep.subr.mxu0 0.0
    %515 = vmatpush1.msra.mxu0 0.0
    %516 = vmatprep.subr.mxu0 0.0
    %517 = vmatpush1.msra.mxu0 0.0
    %518 = vmatprep.subr.mxu0 0.0
    %519 = vmatpush1.msra.mxu0 0.0
    %520 = vmatprep.subr.mxu0 0.0
    %521 = vmatpush1.msra.mxu0 0.0
    %522 = vmatprep.subr.mxu0 0.0
    %523 = vmatpush1.msra.mxu0 0.0
    %524 = vmatprep.subr.mxu0 0.0
    %525 = vmatpush1.msra.mxu0 0.0
    %526 = vmatprep.subr.mxu0 0.0
    %527 = vmatpush1.msra.mxu0 0.0
    %528 = vmatprep.subr.mxu0 0.0
    %529 = vmatpush1.msra.mxu0 0.0
    %530 = vmatprep.subr.mxu0 0.0
    %531 = vmatpush1.msra.mxu0 0.0
    %532 = vmatprep.mubr.f32.mxu0 0.0
    %533 = vmatmul.mubr.f32.gmra.mrb[0].mxu0 %v463
    %v534 = vpop.f32.mrb[0].mxu0
    %v535 = vadd.f32 0.0, %v534
    %v536 = vpop.f32.mrb[0].mxu0
    %537 = vmatprep.mubr.f32.mxu0 0.0
    %538 = vmatmul.mubr.f32.gmra.mrb[0].mxu0 %v466
    %v539 = vpop.f32.mrb[0].mxu0
    %v540 = vadd.f32 0.0, %v539
    %v541 = vpop.f32.mrb[0].mxu0
    %542 = vdwg.mxu0
    %v543 = vmax.f32 %v535, %v540
    %v544 = vsub.f32 %v535, %v543
    %v545 = vmul.f32 %v544, 1.442695
    %v546 = vpow.pop %v545
    %v547 = vsub.f32 %v540, %v543
    %v548 = vmul.f32 %v547, 1.442695
    %v549 = vpow.pop %v548
    %v550 = vadd.f32 %v546, %v549
    %v551 = vrcp.pop %v550
    %v552 = vmul.f32 %v550, %v551
    %v553 = vsub.f32 2.0, %v552
    %v554 = vmul.f32 %v551, %v553
    %v555 = vmul.f32 %v546, %v554
    %v556 = vmul.f32 %v549, %v554
    %vm557 = vcmask 130048
    %v559 = vsel %vm557, %v77, 0
    %v562 = vsel %vm557, %v78, 0
    %v565 = vsel %vm557, %v79, 0
    %v568 = vsel %vm557, %v80, 0
    %v571 = vsel %vm557, %v81, 0
    %v574 = vsel %vm557, %v82, 0
    %v577 = vsel %vm557, %v83, 0
    %v580 = vsel %vm557, %v84, 0
    %582 = vmatprep.subr.mxu0 0.0
    %583 = vmatpush1.msra.mxu0 %v555
    %584 = vmatprep.subr.mxu0 0.0
    %585 = vmatpush1.msra.mxu0 %v556
    %586 = vmatprep.subr.mxu0 0.0
    %587 = vmatpush1.msra.mxu0 0.0
    %588 = vmatprep.subr.mxu0 0.0
    %589 = vmatpush1.msra.mxu0 0.0
    %590 = vmatprep.subr.mxu0 0.0
    %591 = vmatpush1.msra.mxu0 0.0
    %592 = vmatprep.subr.mxu0 0.0
    %593 = vmatpush1.msra.mxu0 0.0
    %594 = vmatprep.subr.mxu0 0.0
    %595 = vmatpush1.msra.mxu0 0.0
    %596 = vmatprep.subr.mxu0 0.0
    %597 = vmatpush1.msra.mxu0 0.0
    %598 = vmatprep.subr.mxu0 0.0
    %599 = vmatpush1.msra.mxu0 0.0
    %600 = vmatprep.subr.mxu0 0.0
    %601 = vmatpush1.msra.mxu0 0.0
    %602 = vmatprep.subr.mxu0 0.0
    %603 = vmatpush1.msra.mxu0 0.0
    %604 = vmatprep.subr.mxu0 0.0
    %605 = vmatpush1.msra.mxu0 0.0
    %606 = vmatprep.subr.mxu0 0.0
    %607 = vmatpush1.msra.mxu0 0.0
    %608 = vmatprep.subr.mxu0 0.0
    %609 = vmatpush1.msra.mxu0 0.0
    %610 = vmatprep.subr.mxu0 0.0
    %611 = vmatpush1.msra.mxu0 0.0
    %612 = vmatprep.subr.mxu0 0.0
    %613 = vmatpush1.msra.mxu0 0.0
    %614 = vmatprep.subr.mxu0 0.0
    %615 = vmatpush1.msra.mxu0 0.0
    %616 = vmatprep.subr.mxu0 0.0
    %617 = vmatpush1.msra.mxu0 0.0
    %618 = vmatprep.subr.mxu0 0.0
    %619 = vmatpush1.msra.mxu0 0.0
    %620 = vmatprep.subr.mxu0 0.0
    %621 = vmatpush1.msra.mxu0 0.0
    %622 = vmatprep.subr.mxu0 0.0
    %623 = vmatpush1.msra.mxu0 0.0
    %624 = vmatprep.subr.mxu0 0.0
    %625 = vmatpush1.msra.mxu0 0.0
    %626 = vmatprep.subr.mxu0 0.0
    %627 = vmatpush1.msra.mxu0 0.0
    %628 = vmatprep.subr.mxu0 0.0
    %629 = vmatpush1.msra.mxu0 0.0
    %630 = vmatprep.subr.mxu0 0.0
    %631 = vmatpush1.msra.mxu0 0.0
    %632 = vmatprep.subr.mxu0 0.0
    %633 = vmatpush1.msra.mxu0 0.0
    %634 = vmatprep.subr.mxu0 0.0
    %635 = vmatpush1.msra.mxu0 0.0
    %636 = vmatprep.subr.mxu0 0.0
    %637 = vmatpush1.msra.mxu0 0.0
    %638 = vmatprep.subr.mxu0 0.0
    %639 = vmatpush1.msra.mxu0 0.0
    %640 = vmatprep.subr.mxu0 0.0
    %641 = vmatpush1.msra.mxu0 0.0
    %642 = vmatprep.subr.mxu0 0.0
    %643 = vmatpush1.msra.mxu0 0.0
    %644 = vmatprep.subr.mxu0 0.0
    %645 = vmatpush1.msra.mxu0 0.0
    %646 = vmatprep.mubr.f32.mxu0 0.0
    %647 = vmatmul.mubr.f32.gmra.mrb[0].mxu0 %v559
    %v648 = vpop.f32.mrb[0].mxu0
    %v649 = vadd.f32 0.0, %v648
    %v650 = vpop.f32.mrb[0].mxu0
    %651 = vmatprep.mubr.f32.mxu0 0.0
    %652 = vmatmul.mubr.f32.gmra.mrb[0].mxu0 %v562
    %v653 = vpop.f32.mrb[0].mxu0
    %v654 = vadd.f32 0.0, %v653
    %v655 = vpop.f32.mrb[0].mxu0
    %656 = vmatprep.mubr.f32.mxu0 0.0
    %657 = vmatmul.mubr.f32.gmra.mrb[0].mxu0 %v565
    %v658 = vpop.f32.mrb[0].mxu0
    %v659 = vadd.f32 0.0, %v658
    %v660 = vpop.f32.mrb[0].mxu0
    %661 = vmatprep.mubr.f32.mxu0 0.0
    %662 = vmatmul.mubr.f32.gmra.mrb[0].mxu0 %v568
    %v663 = vpop.f32.mrb[0].mxu0
    %v664 = vadd.f32 0.0, %v663
    %v665 = vpop.f32.mrb[0].mxu0
    %666 = vmatprep.mubr.f32.mxu0 0.0
    %667 = vmatmul.mubr.f32.gmra.mrb[0].mxu0 %v571
    %v668 = vpop.f32.mrb[0].mxu0
    %v669 = vadd.f32 0.0, %v668
    %v670 = vpop.f32.mrb[0].mxu0
    %671 = vmatprep.mubr.f32.mxu0 0.0
    %672 = vmatmul.mubr.f32.gmra.mrb[0].mxu0 %v574
    %v673 = vpop.f32.mrb[0].mxu0
    %v674 = vadd.f32 0.0, %v673
    %v675 = vpop.f32.mrb[0].mxu0
    %676 = vmatprep.mubr.f32.mxu0 0.0
    %677 = vmatmul.mubr.f32.gmra.mrb[0].mxu0 %v577
    %v678 = vpop.f32.mrb[0].mxu0
    %v679 = vadd.f32 0.0, %v678
    %v680 = vpop.f32.mrb[0].mxu0
    %681 = vmatprep.mubr.f32.mxu0 0.0
    %682 = vmatmul.mubr.f32.gmra.mrb[0].mxu0 %v580
    %v683 = vpop.f32.mrb[0].mxu0
    %v684 = vadd.f32 0.0, %v683
    %v685 = vpop.f32.mrb[0].mxu0
    %686 = vdwg.mxu0
    %v687 = vmul.f32 %v649, %v297
    %v688 = vmul.f32 %v654, %v302
    %v689 = vmul.f32 %v659, %v307
    %v690 = vmul.f32 %v664, %v312
    %v691 = vmul.f32 %v669, %v431
    %v692 = vmul.f32 %v674, %v436
    %v693 = vmul.f32 %v679, %v441
    %v694 = vmul.f32 %v684, %v446
    %v695 = vld [vmem:[%s6] sm:$0xff]
    %v696 = vld [vmem:[%s6 + $0x8] sm:$0xff]
    %v697 = vld [vmem:[%s6 + $0x10] sm:$0xff]
    %v698 = vld [vmem:[%s6 + $0x18] sm:$0xff]
    %700 = vset.pattern.permute.xlu0 0
    %701 = vperm.xlu0 %700, %v695
    %v702 = vpop.permute.xlu0 %701
    %705 = vset.pattern.permute.xlu0 0
    %706 = vperm.xlu0 %705, %v696
    %v707 = vpop.permute.xlu0 %706
    %710 = vset.pattern.permute.xlu0 0
    %711 = vperm.xlu0 %710, %v697
    %v712 = vpop.permute.xlu0 %711
    %715 = vset.pattern.permute.xlu0 0
    %716 = vperm.xlu0 %715, %v698
    %v717 = vpop.permute.xlu0 %716
    %v720 = vsel %vm461, %v85, 0
    %v723 = vsel %vm461, %v86, 0
    %v726 = vsel %vm461, %v87, 0
    %v729 = vsel %vm461, %v88, 0
    %731 = vmatprep.subr.mxu0 0.0
    %732 = vmatpush1.msra.mxu0 %v687
    %733 = vmatprep.subr.mxu0 0.0
    %734 = vmatpush1.msra.mxu0 %v688
    %735 = vmatprep.subr.mxu0 0.0
    %736 = vmatpush1.msra.mxu0 %v689
    %737 = vmatprep.subr.mxu0 0.0
    %738 = vmatpush1.msra.mxu0 %v690
    %739 = vmatprep.subr.mxu0 0.0
    %740 = vmatpush1.msra.mxu0 %v691
    %741 = vmatprep.subr.mxu0 0.0
    %742 = vmatpush1.msra.mxu0 %v692
    %743 = vmatprep.subr.mxu0 0.0
    %744 = vmatpush1.msra.mxu0 %v693
    %745 = vmatprep.subr.mxu0 0.0
    %746 = vmatpush1.msra.mxu0 %v694
    %747 = vmatprep.subr.mxu0 0.0
    %748 = vmatpush1.msra.mxu0 0.0
    %749 = vmatprep.subr.mxu0 0.0
    %750 = vmatpush1.msra.mxu0 0.0
    %751 = vmatprep.subr.mxu0 0.0
    %752 = vmatpush1.msra.mxu0 0.0
    %753 = vmatprep.subr.mxu0 0.0
    %754 = vmatpush1.msra.mxu0 0.0
    %755 = vmatprep.subr.mxu0 0.0
    %756 = vmatpush1.msra.mxu0 0.0
    %757 = vmatprep.subr.mxu0 0.0
    %758 = vmatpush1.msra.mxu0 0.0
    %759 = vmatprep.subr.mxu0 0.0
    %760 = vmatpush1.msra.mxu0 0.0
    %761 = vmatprep.subr.mxu0 0.0
    %762 = vmatpush1.msra.mxu0 0.0
    %763 = vmatprep.subr.mxu0 0.0
    %764 = vmatpush1.msra.mxu0 0.0
    %765 = vmatprep.subr.mxu0 0.0
    %766 = vmatpush1.msra.mxu0 0.0
    %767 = vmatprep.subr.mxu0 0.0
    %768 = vmatpush1.msra.mxu0 0.0
    %769 = vmatprep.subr.mxu0 0.0
    %770 = vmatpush1.msra.mxu0 0.0
    %771 = vmatprep.subr.mxu0 0.0
    %772 = vmatpush1.msra.mxu0 0.0
    %773 = vmatprep.subr.mxu0 0.0
    %774 = vmatpush1.msra.mxu0 0.0
    %775 = vmatprep.subr.mxu0 0.0
    %776 = vmatpush1.msra.mxu0 0.0
    %777 = vmatprep.subr.mxu0 0.0
    %778 = vmatpush1.msra.mxu0 0.0
    %779 = vmatprep.subr.mxu0 0.0
    %780 = vmatpush1.msra.mxu0 0.0
    %781 = vmatprep.subr.mxu0 0.0
    %782 = vmatpush1.msra.mxu0 0.0
    %783 = vmatprep.subr.mxu0 0.0
    %784 = vmatpush1.msra.mxu0 0.0
    %785 = vmatprep.subr.mxu0 0.0
    %786 = vmatpush1.msra.mxu0 0.0
    %787 = vmatprep.subr.mxu0 0.0
    %788 = vmatpush1.msra.mxu0 0.0
    %789 = vmatprep.subr.mxu0 0.0
    %790 = vmatpush1.msra.mxu0 0.0
    %791 = vmatprep.subr.mxu0 0.0
    %792 = vmatpush1.msra.mxu0 0.0
    %793 = vmatprep.subr.mxu0 0.0
    %794 = vmatpush1.msra.mxu0 0.0
    %795 = vmatprep.mubr.f32.mxu0 0.0
    %796 = vmatmul.mubr.f32.gmra.mrb[0].mxu0 %v720
    %v797 = vpop.f32.mrb[0].mxu0
    %v798 = vadd.f32 %v702, %v797
    %v799 = vpop.f32.mrb[0].mxu0
    %800 = vmatprep.mubr.f32.mxu0 0.0
    %801 = vmatmul.mubr.f32.gmra.mrb[0].mxu0 %v723
    %v802 = vpop.f32.mrb[0].mxu0
    %v803 = vadd.f32 %v707, %v802
    %v804 = vpop.f32.mrb[0].mxu0
    %805 = vmatprep.mubr.f32.mxu0 0.0
    %806 = vmatmul.mubr.f32.gmra.mrb[0].mxu0 %v726
    %v807 = vpop.f32.mrb[0].mxu0
    %v808 = vadd.f32 %v712, %v807
    %v809 = vpop.f32.mrb[0].mxu0
    %810 = vmatprep.mubr.f32.mxu0 0.0
    %811 = vmatmul.mubr.f32.gmra.mrb[0].mxu0 %v729
    %v812 = vpop.f32.mrb[0].mxu0
    %v813 = vadd.f32 %v717, %v812
    %v814 = vpop.f32.mrb[0].mxu0
    %815 = vdwg.mxu0
    %v816 = vadd.f32 %v89, %v798
    %v817 = vadd.f32 %v90, %v803
    %v818 = vadd.f32 %v91, %v808
    %v819 = vadd.f32 %v92, %v813
    %v820 = vsel %vm461, %v816, 0.0
    %v821 = vsel %vm461, %v817, 0.0
    %v822 = vadd.f32 %v820, %v821
    %v823 = vsel %vm461, %v818, 0.0
    %v824 = vadd.f32 %v822, %v823
    %v825 = vsel %vm461, %v819, 0.0
    %v826 = vadd.f32 %v824, %v825
    %v827 = vrot.slane %v826, 4
    %v828 = vadd.f32 %v826, %v827
    %v829 = vrot.slane %v828, 2
    %v830 = vadd.f32 %v828, %v829
    %v831 = vrot.slane %v830, 1
    %v832 = vadd.f32 %v830, %v831
    %v833 = vmul.f32 %v832, 0.03125
    %v834 = vsub.f32 %v816, %v833
    %v835 = vsub.f32 %v817, %v833
    %v836 = vsub.f32 %v818, %v833
    %v837 = vsub.f32 %v819, %v833
    %v838 = vmul.f32 %v834, %v834
    %v839 = vmul.f32 %v835, %v835
    %v840 = vmul.f32 %v836, %v836
    %v841 = vmul.f32 %v837, %v837
    %v842 = vsel %vm461, %v838, 0.0
    %v843 = vsel %vm461, %v839, 0.0
    %v844 = vadd.f32 %v842, %v843
    %v845 = vsel %vm461, %v840, 0.0
    %v846 = vadd.f32 %v844, %v845
    %v847 = vsel %vm461, %v841, 0.0
    %v848 = vadd.f32 %v846, %v847
    %v849 = vrot.slane %v848, 4
    %v850 = vadd.f32 %v848, %v849
    %v851 = vrot.slane %v850, 2
    %v852 = vadd.f32 %v850, %v851
    %v853 = vrot.slane %v852, 1
    %v854 = vadd.f32 %v852, %v853
    %v855 = vmul.f32 %v854, 0.03125
    %v856 = vadd.f32 %v855, 1e-05
    %v857 = vrsqrt.pop %v856
    %v858 = vmul.f32 %v834, %v857
    %v859 = vmul.f32 %v835, %v857
    %v860 = vmul.f32 %v836, %v857
    %v861 = vmul.f32 %v837, %v857
    %v862 = vld [vmem:[%s7] sm:$0xff]
    %v863 = vld [vmem:[%s7 + $0x8] sm:$0xff]
    %v864 = vld [vmem:[%s7 + $0x10] sm:$0xff]
    %v865 = vld [vmem:[%s7 + $0x18] sm:$0xff]
    %867 = vset.pattern.permute.xlu0 0
    %868 = vperm.xlu0 %867, %v862
    %v869 = vpop.permute.xlu0 %868
    %872 = vset.pattern.permute.xlu0 0
    %873 = vperm.xlu0 %872, %v863
    %v874 = vpop.permute.xlu0 %873
    %877 = vset.pattern.permute.xlu0 0
    %878 = vperm.xlu0 %877, %v864
    %v879 = vpop.permute.xlu0 %878
    %882 = vset.pattern.permute.xlu0 0
    %883 = vperm.xlu0 %882, %v865
    %v884 = vpop.permute.xlu0 %883
    %v886 = vmul.f32 %v858, %v869
    %v887 = vmul.f32 %v859, %v874
    %v888 = vmul.f32 %v860, %v879
    %v889 = vmul.f32 %v861, %v884
    %v890 = vld [vmem:[%s8] sm:$0xff]
    %v891 = vld [vmem:[%s8 + $0x8] sm:$0xff]
    %v892 = vld [vmem:[%s8 + $0x10] sm:$0xff]
    %v893 = vld [vmem:[%s8 + $0x18] sm:$0xff]
    %895 = vset.pattern.permute.xlu0 0
    %896 = vperm.xlu0 %895, %v890
    %v897 = vpop.permute.xlu0 %896
    %900 = vset.pattern.permute.xlu0 0
    %901 = vperm.xlu0 %900, %v891
    %v902 = vpop.permute.xlu0 %901
    %905 = vset.pattern.permute.xlu0 0
    %906 = vperm.xlu0 %905, %v892
    %v907 = vpop.permute.xlu0 %906
    %910 = vset.pattern.permute.xlu0 0
    %911 = vperm.xlu0 %910, %v893
    %v912 = vpop.permute.xlu0 %911
    %v914 = vadd.f32 %v886, %v897
    %v915 = vadd.f32 %v887, %v902
    %v916 = vadd.f32 %v888, %v907
    %v917 = vadd.f32 %v889, %v912
    %v918 = vld [vmem:[%s9] sm:$0xff]
    %v919 = vld [vmem:[%s9 + $0x8] sm:$0xff]
    %v920 = vld [vmem:[%s9 + $0x10] sm:$0xff]
    %v921 = vld [vmem:[%s9 + $0x18] sm:$0xff]
    %v922 = vld [vmem:[%s9 + $0x20] sm:$0xff]
    %v923 = vld [vmem:[%s9 + $0x28] sm:$0xff]
    %v924 = vld [vmem:[%s9 + $0x30] sm:$0xff]
    %v925 = vld [vmem:[%s9 + $0x38] sm:$0xff]
    %v926 = vld [vmem:[%s10] sm:$0xff]
    %v927 = vld [vmem:[%s10 + $0x8] sm:$0xff]
    %v928 = vld [vmem:[%s10 + $0x10] sm:$0xff]
    %v929 = vld [vmem:[%s10 + $0x18] sm:$0xff]
    %v930 = vld [vmem:[%s10 + $0x20] sm:$0xff]
    %v931 = vld [vmem:[%s10 + $0x28] sm:$0xff]
    %v932 = vld [vmem:[%s10 + $0x30] sm:$0xff]
    %v933 = vld [vmem:[%s10 + $0x38] sm:$0xff]
    %935 = vset.pattern.permute.xlu0 0
    %936 = vperm.xlu0 %935, %v926
    %v937 = vpop.permute.xlu0 %936
    %940 = vset.pattern.permute.xlu0 0
    %941 = vperm.xlu0 %940, %v927
    %v942 = vpop.permute.xlu0 %941
    %945 = vset.pattern.permute.xlu0 0
    %946 = vperm.xlu0 %945, %v928
    %v947 = vpop.permute.xlu0 %946
    %950 = vset.pattern.permute.xlu0 0
    %951 = vperm.xlu0 %950, %v929
    %v952 = vpop.permute.xlu0 %951
    %955 = vset.pattern.permute.xlu0 0
    %956 = vperm.xlu0 %955, %v930
    %v957 = vpop.permute.xlu0 %956
    %960 = vset.pattern.permute.xlu0 0
    %961 = vperm.xlu0 %960, %v931
    %v962 = vpop.permute.xlu0 %961
    %965 = vset.pattern.permute.xlu0 0
    %966 = vperm.xlu0 %965, %v932
    %v967 = vpop.permute.xlu0 %966
    %970 = vset.pattern.permute.xlu0 0
    %971 = vperm.xlu0 %970, %v933
    %v972 = vpop.permute.xlu0 %971
    %v975 = vsel %vm153, %v918, 0
    %v978 = vsel %vm153, %v919, 0
    %v981 = vsel %vm153, %v920, 0
    %v984 = vsel %vm153, %v921, 0
    %v987 = vsel %vm153, %v922, 0
    %v990 = vsel %vm153, %v923, 0
    %v993 = vsel %vm153, %v924, 0
    %v996 = vsel %vm153, %v925, 0
    %998 = vmatprep.subr.mxu0 0.0
    %999 = vmatpush1.msra.mxu0 %v914
    %1000 = vmatprep.subr.mxu0 0.0
    %1001 = vmatpush1.msra.mxu0 %v915
    %1002 = vmatprep.subr.mxu0 0.0
    %1003 = vmatpush1.msra.mxu0 %v916
    %1004 = vmatprep.subr.mxu0 0.0
    %1005 = vmatpush1.msra.mxu0 %v917
    %1006 = vmatprep.subr.mxu0 0.0
    %1007 = vmatpush1.msra.mxu0 0.0
    %1008 = vmatprep.subr.mxu0 0.0
    %1009 = vmatpush1.msra.mxu0 0.0
    %1010 = vmatprep.subr.mxu0 0.0
    %1011 = vmatpush1.msra.mxu0 0.0
    %1012 = vmatprep.subr.mxu0 0.0
    %1013 = vmatpush1.msra.mxu0 0.0
    %1014 = vmatprep.subr.mxu0 0.0
    %1015 = vmatpush1.msra.mxu0 0.0
    %1016 = vmatprep.subr.mxu0 0.0
    %1017 = vmatpush1.msra.mxu0 0.0
    %1018 = vmatprep.subr.mxu0 0.0
    %1019 = vmatpush1.msra.mxu0 0.0
    %1020 = vmatprep.subr.mxu0 0.0
    %1021 = vmatpush1.msra.mxu0 0.0
    %1022 = vmatprep.subr.mxu0 0.0
    %1023 = vmatpush1.msra.mxu0 0.0
    %1024 = vmatprep.subr.mxu0 0.0
    %1025 = vmatpush1.msra.mxu0 0.0
    %1026 = vmatprep.subr.mxu0 0.0
    %1027 = vmatpush1.msra.mxu0 0.0
    %1028 = vmatprep.subr.mxu0 0.0
    %1029 = vmatpush1.msra.mxu0 0.0
    %1030 = vmatprep.subr.mxu0 0.0
    %1031 = vmatpush1.msra.mxu0 0.0
    %1032 = vmatprep.subr.mxu0 0.0
    %1033 = vmatpush1.msra.mxu0 0.0
    %1034 = vmatprep.subr.mxu0 0.0
    %1035 = vmatpush1.msra.mxu0 0.0
    %1036 = vmatprep.subr.mxu0 0.0
    %1037 = vmatpush1.msra.mxu0 0.0
    %1038 = vmatprep.subr.mxu0 0.0
    %1039 = vmatpush1.msra.mxu0 0.0
    %1040 = vmatprep.subr.mxu0 0.0
    %1041 = vmatpush1.msra.mxu0 0.0
    %1042 = vmatprep.subr.mxu0 0.0
    %1043 = vmatpush1.msra.mxu0 0.0
    %1044 = vmatprep.subr.mxu0 0.0
    %1045 = vmatpush1.msra.mxu0 0.0
    %1046 = vmatprep.subr.mxu0 0.0
    %1047 = vmatpush1.msra.mxu0 0.0
    %1048 = vmatprep.subr.mxu0 0.0
    %1049 = vmatpush1.msra.mxu0 0.0
    %1050 = vmatprep.subr.mxu0 0.0
    %1051 = vmatpush1.msra.mxu0 0.0
    %1052 = vmatprep.subr.mxu0 0.0
    %1053 = vmatpush1.msra.mxu0 0.0
    %1054 = vmatprep.subr.mxu0 0.0
    %1055 = vmatpush1.msra.mxu0 0.0
    %1056 = vmatprep.subr.mxu0 0.0
    %1057 = vmatpush1.msra.mxu0 0.0
    %1058 = vmatprep.subr.mxu0 0.0
    %1059 = vmatpush1.msra.mxu0 0.0
    %1060 = vmatprep.subr.mxu0 0.0
    %1061 = vmatpush1.msra.mxu0 0.0
    %1062 = vmatprep.mubr.f32.mxu0 0.0
    %1063 = vmatmul.mubr.f32.gmra.mrb[0].mxu0 %v975
    %v1064 = vpop.f32.mrb[0].mxu0
    %v1065 = vadd.f32 %v937, %v1064
    %v1066 = vpop.f32.mrb[0].mxu0
    %1067 = vmatprep.mubr.f32.mxu0 0.0
    %1068 = vmatmul.mubr.f32.gmra.mrb[0].mxu0 %v978
    %v1069 = vpop.f32.mrb[0].mxu0
    %v1070 = vadd.f32 %v942, %v1069
    %v1071 = vpop.f32.mrb[0].mxu0
    %1072 = vmatprep.mubr.f32.mxu0 0.0
    %1073 = vmatmul.mubr.f32.gmra.mrb[0].mxu0 %v981
    %v1074 = vpop.f32.mrb[0].mxu0
    %v1075 = vadd.f32 %v947, %v1074
    %v1076 = vpop.f32.mrb[0].mxu0
    %1077 = vmatprep.mubr.f32.mxu0 0.0
    %1078 = vmatmul.mubr.f32.gmra.mrb[0].mxu0 %v984
    %v1079 = vpop.f32.mrb[0].mxu0
    %v1080 = vadd.f32 %v952, %v1079
    %v1081 = vpop.f32.mrb[0].mxu0
    %1082 = vmatprep.mubr.f32.mxu0 0.0
    %1083 = vmatmul.mubr.f32.gmra.mrb[0].mxu0 %v987
    %v1084 = vpop.f32.mrb[0].mxu0
    %v1085 = vadd.f32 %v957, %v1084
    %v1086 = vpop.f32.mrb[0].mxu0
    %1087 = vmatprep.mubr.f32.mxu0 0.0
    %1088 = vmatmul.mubr.f32.gmra.mrb[0].mxu0 %v990
    %v1089 = vpop.f32.mrb[0].mxu0
    %v1090 = vadd.f32 %v962, %v1089
    %v1091 = vpop.f32.mrb[0].mxu0
    %1092 = vmatprep.mubr.f32.mxu0 0.0
    %1093 = vmatmul.mubr.f32.gmra.mrb[0].mxu0 %v993
    %v1094 = vpop.f32.mrb[0].mxu0
    %v1095 = vadd.f32 %v967, %v1094
    %v1096 = vpop.f32.mrb[0].mxu0
    %1097 = vmatprep.mubr.f32.mxu0 0.0
    %1098 = vmatmul.mubr.f32.gmra.mrb[0].mxu0 %v996
    %v1099 = vpop.f32.mrb[0].mxu0
    %v1100 = vadd.f32 %v972, %v1099
    %v1101 = vpop.f32.mrb[0].mxu0
    %1102 = vdwg.mxu0
    %v1103 = vmax.f32 %v1065, 0.0
    %v1104 = vmax.f32 %v1070, 0.0
    %v1105 = vmax.f32 %v1075, 0.0
    %v1106 = vmax.f32 %v1080, 0.0
    %v1107 = vmax.f32 %v1085, 0.0
    %v1108 = vmax.f32 %v1090, 0.0
    %v1109 = vmax.f32 %v1095, 0.0
    %v1110 = vmax.f32 %v1100, 0.0
    %v1111 = vld [vmem:[%s11] sm:$0xff]
    %v1112 = vld [vmem:[%s11 + $0x8] sm:$0xff]
    %v1113 = vld [vmem:[%s11 + $0x10] sm:$0xff]
    %v1114 = vld [vmem:[%s11 + $0x18] sm:$0xff]
    %v1115 = vld [vmem:[%s12] sm:$0xff]
    %v1116 = vld [vmem:[%s12 + $0x8] sm:$0xff]
    %v1117 = vld [vmem:[%s12 + $0x10] sm:$0xff]
    %v1118 = vld [vmem:[%s12 + $0x18] sm:$0xff]
    %1120 = vset.pattern.permute.xlu0 0
    %1121 = vperm.xlu0 %1120, %v1115
    %v1122 = vpop.permute.xlu0 %1121
    %1125 = vset.pattern.permute.xlu0 0
    %1126 = vperm.xlu0 %1125, %v1116
    %v1127 = vpop.permute.xlu0 %1126
    %1130 = vset.pattern.permute.xlu0 0
    %1131 = vperm.xlu0 %1130, %v1117
    %v1132 = vpop.permute.xlu0 %1131
    %1135 = vset.pattern.permute.xlu0 0
    %1136 = vperm.xlu0 %1135, %v1118
    %v1137 = vpop.permute.xlu0 %1136
    %v1140 = vsel %vm461, %v1111, 0
    %v1143 = vsel %vm461, %v1112, 0
    %v1146 = vsel %vm461, %v1113, 0
    %v1149 = vsel %vm461, %v1114, 0
    %1151 = vmatprep.subr.mxu0 0.0
    %1152 = vmatpush1.msra.mxu0 %v1103
    %1153 = vmatprep.subr.mxu0 0.0
    %1154 = vmatpush1.msra.mxu0 %v1104
    %1155 = vmatprep.subr.mxu0 0.0
    %1156 = vmatpush1.msra.mxu0 %v1105
    %1157 = vmatprep.subr.mxu0 0.0
    %1158 = vmatpush1.msra.mxu0 %v1106
    %1159 = vmatprep.subr.mxu0 0.0
    %1160 = vmatpush1.msra.mxu0 %v1107
    %1161 = vmatprep.subr.mxu0 0.0
    %1162 = vmatpush1.msra.mxu0 %v1108
    %1163 = vmatprep.subr.mxu0 0.0
    %1164 = vmatpush1.msra.mxu0 %v1109
    %1165 = vmatprep.subr.mxu0 0.0
    %1166 = vmatpush1.msra.mxu0 %v1110
    %1167 = vmatprep.subr.mxu0 0.0
    %1168 = vmatpush1.msra.mxu0 0.0
    %1169 = vmatprep.subr.mxu0 0.0
    %1170 = vmatpush1.msra.mxu0 0.0
    %1171 = vmatprep.subr.mxu0 0.0
    %1172 = vmatpush1.msra.mxu0 0.0
    %1173 = vmatprep.subr.mxu0 0.0
    %1174 = vmatpush1.msra.mxu0 0.0
    %1175 = vmatprep.subr.mxu0 0.0
    %1176 = vmatpush1.msra.mxu0 0.0
    %1177 = vmatprep.subr.mxu0 0.0
    %1178 = vmatpush1.msra.mxu0 0.0
    %1179 = vmatprep.subr.mxu0 0.0
    %1180 = vmatpush1.msra.mxu0 0.0
    %1181 = vmatprep.subr.mxu0 0.0
    %1182 = vmatpush1.msra.mxu0 0.0
    %1183 = vmatprep.subr.mxu0 0.0
    %1184 = vmatpush1.msra.mxu0 0.0
    %1185 = vmatprep.subr.mxu0 0.0
    %1186 = vmatpush1.msra.mxu0 0.0
    %1187 = vmatprep.subr.mxu0 0.0
    %1188 = vmatpush1.msra.mxu0 0.0
    %1189 = vmatprep.subr.mxu0 0.0
    %1190 = vmatpush1.msra.mxu0 0.0
    %1191 = vmatprep.subr.mxu0 0.0
    %1192 = vmatpush1.msra.mxu0 0.0
    %1193 = vmatprep.subr.mxu0 0.0
    %1194 = vmatpush1.msra.mxu0 0.0
    %1195 = vmatprep.subr.mxu0 0.0
    %1196 = vmatpush1.msra.mxu0 0.0
    %1197 = vmatprep.subr.mxu0 0.0
    %1198 = vmatpush1.msra.mxu0 0.0
    %1199 = vmatprep.subr.mxu0 0.0
    %1200 = vmatpush1.msra.mxu0 0.0
    %1201 = vmatprep.subr.mxu0 0.0
    %1202 = vmatpush1.msra.mxu0 0.0
    %1203 = vmatprep.subr.mxu0 0.0
    %1204 = vmatpush1.msra.mxu0 0.0
    %1205 = vmatprep.subr.mxu0 0.0
    %1206 = vmatpush1.msra.mxu0 0.0
    %1207 = vmatprep.subr.mxu0 0.0
    %1208 = vmatpush1.msra.mxu0 0.0
    %1209 = vmatprep.subr.mxu0 0.0
    %1210 = vmatpush1.msra.mxu0 0.0
    %1211 = vmatprep.subr.mxu0 0.0
    %1212 = vmatpush1.msra.mxu0 0.0
    %1213 = vmatprep.subr.mxu0 0.0
    %1214 = vmatpush1.msra.mxu0 0.0
    %1215 = vmatprep.mubr.f32.mxu0 0.0
    %1216 = vmatmul.mubr.f32.gmra.mrb[0].mxu0 %v1140
    %v1217 = vpop.f32.mrb[0].mxu0
    %v1218 = vadd.f32 %v1122, %v1217
    %v1219 = vpop.f32.mrb[0].mxu0
    %1220 = vmatprep.mubr.f32.mxu0 0.0
    %1221 = vmatmul.mubr.f32.gmra.mrb[0].mxu0 %v1143
    %v1222 = vpop.f32.mrb[0].mxu0
    %v1223 = vadd.f32 %v1127, %v1222
    %v1224 = vpop.f32.mrb[0].mxu0
    %1225 = vmatprep.mubr.f32.mxu0 0.0
    %1226 = vmatmul.mubr.f32.gmra.mrb[0].mxu0 %v1146
    %v1227 = vpop.f32.mrb[0].mxu0
    %v1228 = vadd.f32 %v1132, %v1227
    %v1229 = vpop.f32.mrb[0].mxu0
    %1230 = vmatprep.mubr.f32.mxu0 0.0
    %1231 = vmatmul.mubr.f32.gmra.mrb[0].mxu0 %v1149
    %v1232 = vpop.f32.mrb[0].mxu0
    %v1233 = vadd.f32 %v1137, %v1232
    %v1234 = vpop.f32.mrb[0].mxu0
    %1235 = vdwg.mxu0
    %v1236 = vadd.f32 %v914, %v1218
    %v1237 = vadd.f32 %v915, %v1223
    %v1238 = vadd.f32 %v916, %v1228
    %v1239 = vadd.f32 %v917, %v1233
    %v1240 = vsel %vm461, %v1236, 0.0
    %v1241 = vsel %vm461, %v1237, 0.0
    %v1242 = vadd.f32 %v1240, %v1241
    %v1243 = vsel %vm461, %v1238, 0.0
    %v1244 = vadd.f32 %v1242, %v1243
    %v1245 = vsel %vm461, %v1239, 0.0
    %v1246 = vadd.f32 %v1244, %v1245
    %v1247 = vrot.slane %v1246, 4
    %v1248 = vadd.f32 %v1246, %v1247
    %v1249 = vrot.slane %v1248, 2
    %v1250 = vadd.f32 %v1248, %v1249
    %v1251 = vrot.slane %v1250, 1
    %v1252 = vadd.f32 %v1250, %v1251
    %v1253 = vmul.f32 %v1252, 0.03125
    %v1254 = vsub.f32 %v1236, %v1253
    %v1255 = vsub.f32 %v1237, %v1253
    %v1256 = vsub.f32 %v1238, %v1253
    %v1257 = vsub.f32 %v1239, %v1253
    %v1258 = vmul.f32 %v1254, %v1254
    %v1259 = vmul.f32 %v1255, %v1255
    %v1260 = vmul.f32 %v1256, %v1256
    %v1261 = vmul.f32 %v1257, %v1257
    %v1262 = vsel %vm461, %v1258, 0.0
    %v1263 = vsel %vm461, %v1259, 0.0
    %v1264 = vadd.f32 %v1262, %v1263
    %v1265 = vsel %vm461, %v1260, 0.0
    %v1266 = vadd.f32 %v1264, %v1265
    %v1267 = vsel %vm461, %v1261, 0.0
    %v1268 = vadd.f32 %v1266, %v1267
    %v1269 = vrot.slane %v1268, 4
    %v1270 = vadd.f32 %v1268, %v1269
    %v1271 = vrot.slane %v1270, 2
    %v1272 = vadd.f32 %v1270, %v1271
    %v1273 = vrot.slane %v1272, 1
    %v1274 = vadd.f32 %v1272, %v1273
    %v1275 = vmul.f32 %v1274, 0.03125
    %v1276 = vadd.f32 %v1275, 1e-05
    %v1277 = vrsqrt.pop %v1276
    %v1278 = vmul.f32 %v1254, %v1277
    %v1279 = vmul.f32 %v1255, %v1277
    %v1280 = vmul.f32 %v1256, %v1277
    %v1281 = vmul.f32 %v1257, %v1277
    %v1282 = vld [vmem:[%s13] sm:$0xff]
    %v1283 = vld [vmem:[%s13 + $0x8] sm:$0xff]
    %v1284 = vld [vmem:[%s13 + $0x10] sm:$0xff]
    %v1285 = vld [vmem:[%s13 + $0x18] sm:$0xff]
    %1287 = vset.pattern.permute.xlu0 0
    %1288 = vperm.xlu0 %1287, %v1282
    %v1289 = vpop.permute.xlu0 %1288
    %1292 = vset.pattern.permute.xlu0 0
    %1293 = vperm.xlu0 %1292, %v1283
    %v1294 = vpop.permute.xlu0 %1293
    %1297 = vset.pattern.permute.xlu0 0
    %1298 = vperm.xlu0 %1297, %v1284
    %v1299 = vpop.permute.xlu0 %1298
    %1302 = vset.pattern.permute.xlu0 0
    %1303 = vperm.xlu0 %1302, %v1285
    %v1304 = vpop.permute.xlu0 %1303
    %v1306 = vmul.f32 %v1278, %v1289
    %v1307 = vmul.f32 %v1279, %v1294
    %v1308 = vmul.f32 %v1280, %v1299
    %v1309 = vmul.f32 %v1281, %v1304
    %v1310 = vld [vmem:[%s14] sm:$0xff]
    %v1311 = vld [vmem:[%s14 + $0x8] sm:$0xff]
    %v1312 = vld [vmem:[%s14 + $0x10] sm:$0xff]
    %v1313 = vld [vmem:[%s14 + $0x18] sm:$0xff]
    %1315 = vset.pattern.permute.xlu0 0
    %1316 = vperm.xlu0 %1315, %v1310
    %v1317 = vpop.permute.xlu0 %1316
    %1320 = vset.pattern.permute.xlu0 0
    %1321 = vperm.xlu0 %1320, %v1311
    %v1322 = vpop.permute.xlu0 %1321
    %1325 = vset.pattern.permute.xlu0 0
    %1326 = vperm.xlu0 %1325, %v1312
    %v1327 = vpop.permute.xlu0 %1326
    %1330 = vset.pattern.permute.xlu0 0
    %1331 = vperm.xlu0 %1330, %v1313
    %v1332 = vpop.permute.xlu0 %1331
    %v1334 = vadd.f32 %v1306, %v1317
    %v1335 = vadd.f32 %v1307, %v1322
    %v1336 = vadd.f32 %v1308, %v1327
    %v1337 = vadd.f32 %v1309, %v1332
    %1338 = vst.msk [vmem:[#allocation2] sm:$0xff] %vm461, %v1334
    %1339 = vst.msk [vmem:[#allocation2 + $0x8] sm:$0xff] %vm461, %v1335
    %1340 = vst.msk [vmem:[#allocation2 + $0x10] sm:$0xff] %vm461, %v1336
    %1341 = vst.msk [vmem:[#allocation2 + $0x18] sm:$0xff] %vm461, %v1337
    %v1342 = vmul.f32 %v449, %v277
    %v1343 = vmul.f32 %v450, %v282
    %v1344 = vmul.f32 %v451, %v287
    %v1345 = vmul.f32 %v452, %v292
    %v1346 = vmul.f32 %v449, %v411
    %v1347 = vmul.f32 %v450, %v416
    %v1348 = vmul.f32 %v451, %v421
    %v1349 = vmul.f32 %v452, %v426
    %1350 = vmatprep.subr.mxu0 0.0
    %1351 = vmatpush1.msra.mxu0 %v1342
    %1352 = vmatprep.subr.mxu0 0.0
    %1353 = vmatpush1.msra.mxu0 %v1343
    %1354 = vmatprep.subr.mxu0 0.0
    %1355 = vmatpush1.msra.mxu0 %v1344
    %1356 = vmatprep.subr.mxu0 0.0
    %1357 = vmatpush1.msra.mxu0 %v1345
    %1358 = vmatprep.subr.mxu0 0.0
    %1359 = vmatpush1.msra.mxu0 %v1346
    %1360 = vmatprep.subr.mxu0 0.0
    %1361 = vmatpush1.msra.mxu0 %v1347
    %1362 = vmatprep.subr.mxu0 0.0
    %1363 = vmatpush1.msra.mxu0 %v1348
    %1364 = vmatprep.subr.mxu0 0.0
    %1365 = vmatpush1.msra.mxu0 %v1349
    %1366 = vmatprep.subr.mxu0 0.0
    %1367 = vmatpush1.msra.mxu0 0.0
    %1368 = vmatprep.subr.mxu0 0.0
    %1369 = vmatpush1.msra.mxu0 0.0
    %1370 = vmatprep.subr.mxu0 0.0
    %1371 = vmatpush1.msra.mxu0 0.0
    %1372 = vmatprep.subr.mxu0 0.0
    %1373 = vmatpush1.msra.mxu0 0.0
    %1374 = vmatprep.subr.mxu0 0.0
    %1375 = vmatpush1.msra.mxu0 0.0
    %1376 = vmatprep.subr.mxu0 0.0
    %1377 = vmatpush1.msra.mxu0 0.0
    %1378 = vmatprep.subr.mxu0 0.0
    %1379 = vmatpush1.msra.mxu0 0.0
    %1380 = vmatprep.subr.mxu0 0.0
    %1381 = vmatpush1.msra.mxu0 0.0
    %1382 = vmatprep.subr.mxu0 0.0
    %1383 = vmatpush1.msra.mxu0 0.0
    %1384 = vmatprep.subr.mxu0 0.0
    %1385 = vmatpush1.msra.mxu0 0.0
    %1386 = vmatprep.subr.mxu0 0.0
    %1387 = vmatpush1.msra.mxu0 0.0
    %1388 = vmatprep.subr.mxu0 0.0
    %1389 = vmatpush1.msra.mxu0 0.0
    %1390 = vmatprep.subr.mxu0 0.0
    %1391 = vmatpush1.msra.mxu0 0.0
    %1392 = vmatprep.subr.mxu0 0.0
    %1393 = vmatpush1.msra.mxu0 0.0
    %1394 = vmatprep.subr.mxu0 0.0
    %1395 = vmatpush1.msra.mxu0 0.0
    %1396 = vmatprep.subr.mxu0 0.0
    %1397 = vmatpush1.msra.mxu0 0.0
    %1398 = vmatprep.subr.mxu0 0.0
    %1399 = vmatpush1.msra.mxu0 0.0
    %1400 = vmatprep.subr.mxu0 0.0
    %1401 = vmatpush1.msra.mxu0 0.0
    %1402 = vmatprep.subr.mxu0 0.0
    %1403 = vmatpush1.msra.mxu0 0.0
    %1404 = vmatprep.subr.mxu0 0.0
    %1405 = vmatpush1.msra.mxu0 0.0
    %1406 = vmatprep.subr.mxu0 0.0
    %1407 = vmatpush1.msra.mxu0 0.0
    %1408 = vmatprep.subr.mxu0 0.0
    %1409 = vmatpush1.msra.mxu0 0.0
    %1410 = vmatprep.subr.mxu0 0.0
    %1411 = vmatpush1.msra.mxu0 0.0
    %1412 = vmatprep.subr.mxu0 0.0
    %1413 = vmatpush1.msra.mxu0 0.0
    %1414 = vmatprep.mubr.f32.mxu0 0.0
    %1415 = vmatmul.mubr.f32.gmra.mrb[0].mxu0 %v463
    %v1416 = vpop.f32.mrb[0].mxu0
    %v1417 = vadd.f32 0.0, %v1416
    %v1418 = vpop.f32.mrb[0].mxu0
    %1419 = vmatprep.mubr.f32.mxu0 0.0
    %1420 = vmatmul.mubr.f32.gmra.mrb[0].mxu0 %v466
    %v1421 = vpop.f32.mrb[0].mxu0
    %v1422 = vadd.f32 0.0, %v1421
    %v1423 = vpop.f32.mrb[0].mxu0
    %1424 = vdwg.mxu0
    %v1425 = vmax.f32 %v1417, %v1422
    %v1426 = vsub.f32 %v1417, %v1425
    %v1427 = vmul.f32 %v1426, 1.442695
    %v1428 = vpow.pop %v1427
    %v1429 = vsub.f32 %v1422, %v1425
    %v1430 = vmul.f32 %v1429, 1.442695
    %v1431 = vpow.pop %v1430
    %v1432 = vadd.f32 %v1428, %v1431
    %v1433 = vrcp.pop %v1432
    %v1434 = vmul.f32 %v1432, %v1433
    %v1435 = vsub.f32 2.0, %v1434
    %v1436 = vmul.f32 %v1433, %v1435
    %v1437 = vmul.f32 %v1428, %v1436
    %v1438 = vmul.f32 %v1431, %v1436
    %1439 = vmatprep.subr.mxu0 0.0
    %1440 = vmatpush1.msra.mxu0 %v1437
    %1441 = vmatprep.subr.mxu0 0.0
    %1442 = vmatpush1.msra.mxu0 %v1438
    %1443 = vmatprep.subr.mxu0 0.0
    %1444 = vmatpush1.msra.mxu0 0.0
    %1445 = vmatprep.subr.mxu0 0.0
    %1446 = vmatpush1.msra.mxu0 0.0
    %1447 = vmatprep.subr.mxu0 0.0
    %1448 = vmatpush1.msra.mxu0 0.0
    %1449 = vmatprep.subr.mxu0 0.0
    %1450 = vmatpush1.msra.mxu0 0.0
    %1451 = vmatprep.subr.mxu0 0.0
    %1452 = vmatpush1.msra.mxu0 0.0
    %1453 = vmatprep.subr.mxu0 0.0
    %1454 = vmatpush1.msra.mxu0 0.0
    %1455 = vmatprep.subr.mxu0 0.0
    %1456 = vmatpush1.msra.mxu0 0.0
    %1457 = vmatprep.subr.mxu0 0.0
    %1458 = vmatpush1.msra.mxu0 0.0
    %1459 = vmatprep.subr.mxu0 0.0
    %1460 = vmatpush1.msra.mxu0 0.0
    %1461 = vmatprep.subr.mxu0 0.0
    %1462 = vmatpush1.msra.mxu0 0.0
    %1463 = vmatprep.subr.mxu0 0.0
    %1464 = vmatpush1.msra.mxu0 0.0
    %1465 = vmatprep.subr.mxu0 0.0
    %1466 = vmatpush1.msra.mxu0 0.0
    %1467 = vmatprep.subr.mxu0 0.0
    %1468 = vmatpush1.msra.mxu0 0.0
    %1469 = vmatprep.subr.mxu0 0.0
    %1470 = vmatpush1.msra.mxu0 0.0
    %1471 = vmatprep.subr.mxu0 0.0
    %1472 = vmatpush1.msra.mxu0 0.0
    %1473 = vmatprep.subr.mxu0 0.0
    %1474 = vmatpush1.msra.mxu0 0.0
    %1475 = vmatprep.subr.mxu0 0.0
    %1476 = vmatpush1.msra.mxu0 0.0
    %1477 = vmatprep.subr.mxu0 0.0
    %1478 = vmatpush1.msra.mxu0 0.0
    %1479 = vmatprep.subr.mxu0 0.0
    %1480 = vmatpush1.msra.mxu0 0.0
    %1481 = vmatprep.subr.mxu0 0.0
    %1482 = vmatpush1.msra.mxu0 0.0
    %1483 = vmatprep.subr.mxu0 0.0
    %1484 = vmatpush1.msra.mxu0 0.0
    %1485 = vmatprep.subr.mxu0 0.0
    %1486 = vmatpush1.msra.mxu0 0.0
    %1487 = vmatprep.subr.mxu0 0.0
    %1488 = vmatpush1.msra.mxu0 0.0
    %1489 = vmatprep.subr.mxu0 0.0
    %1490 = vmatpush1.msra.mxu0 0.0
    %1491 = vmatprep.subr.mxu0 0.0
    %1492 = vmatpush1.msra.mxu0 0.0
    %1493 = vmatprep.subr.mxu0 0.0
    %1494 = vmatpush1.msra.mxu0 0.0
    %1495 = vmatprep.subr.mxu0 0.0
    %1496 = vmatpush1.msra.mxu0 0.0
    %1497 = vmatprep.subr.mxu0 0.0
    %1498 = vmatpush1.msra.mxu0 0.0
    %1499 = vmatprep.subr.mxu0 0.0
    %1500 = vmatpush1.msra.mxu0 0.0
    %1501 = vmatprep.subr.mxu0 0.0
    %1502 = vmatpush1.msra.mxu0 0.0
    %1503 = vmatprep.mubr.f32.mxu0 0.0
    %1504 = vmatmul.mubr.f32.gmra.mrb[0].mxu0 %v559
    %v1505 = vpop.f32.mrb[0].mxu0
    %v1506 = vadd.f32 0.0, %v1505
    %v1507 = vpop.f32.mrb[0].mxu0
    %1508 = vmatprep.mubr.f32.mxu0 0.0
    %1509 = vmatmul.mubr.f32.gmra.mrb[0].mxu0 %v562
    %v1510 = vpop.f32.mrb[0].mxu0
    %v1511 = vadd.f32 0.0, %v1510
    %v1512 = vpop.f32.mrb[0].mxu0
    %1513 = vmatprep.mubr.f32.mxu0 0.0
    %1514 = vmatmul.mubr.f32.gmra.mrb[0].mxu0 %v565
    %v1515 = vpop.f32.mrb[0].mxu0
    %v1516 = vadd.f32 0.0, %v1515
    %v1517 = vpop.f32.mrb[0].mxu0
    %1518 = vmatprep.mubr.f32.mxu0 0.0
    %1519 = vmatmul.mubr.f32.gmra.mrb[0].mxu0 %v568
    %v1520 = vpop.f32.mrb[0].mxu0
    %v1521 = vadd.f32 0.0, %v1520
    %v1522 = vpop.f32.mrb[0].mxu0
    %1523 = vmatprep.mubr.f32.mxu0 0.0
    %1524 = vmatmul.mubr.f32.gmra.mrb[0].mxu0 %v571
    %v1525 = vpop.f32.mrb[0].mxu0
    %v1526 = vadd.f32 0.0, %v1525
    %v1527 = vpop.f32.mrb[0].mxu0
    %1528 = vmatprep.mubr.f32.mxu0 0.0
    %1529 = vmatmul.mubr.f32.gmra.mrb[0].mxu0 %v574
    %v1530 = vpop.f32.mrb[0].mxu0
    %v1531 = vadd.f32 0.0, %v1530
    %v1532 = vpop.f32.mrb[0].mxu0
    %1533 = vmatprep.mubr.f32.mxu0 0.0
    %1534 = vmatmul.mubr.f32.gmra.mrb[0].mxu0 %v577
    %v1535 = vpop.f32.mrb[0].mxu0
    %v1536 = vadd.f32 0.0, %v1535
    %v1537 = vpop.f32.mrb[0].mxu0
    %1538 = vmatprep.mubr.f32.mxu0 0.0
    %1539 = vmatmul.mubr.f32.gmra.mrb[0].mxu0 %v580
    %v1540 = vpop.f32.mrb[0].mxu0
    %v1541 = vadd.f32 0.0, %v1540
    %v1542 = vpop.f32.mrb[0].mxu0
    %1543 = vdwg.mxu0
    %v1544 = vmul.f32 %v1506, %v297
    %v1545 = vmul.f32 %v1511, %v302
    %v1546 = vmul.f32 %v1516, %v307
    %v1547 = vmul.f32 %v1521, %v312
    %v1548 = vmul.f32 %v1526, %v431
    %v1549 = vmul.f32 %v1531, %v436
    %v1550 = vmul.f32 %v1536, %v441
    %v1551 = vmul.f32 %v1541, %v446
    %v1552 = vld [vmem:[%s6] sm:$0xff]
    %v1553 = vld [vmem:[%s6 + $0x8] sm:$0xff]
    %v1554 = vld [vmem:[%s6 + $0x10] sm:$0xff]
    %v1555 = vld [vmem:[%s6 + $0x18] sm:$0xff]
    %1557 = vset.pattern.permute.xlu0 0
    %1558 = vperm.xlu0 %1557, %v1552
    %v1559 = vpop.permute.xlu0 %1558
    %1562 = vset.pattern.permute.xlu0 0
    %1563 = vperm.xlu0 %1562, %v1553
    %v1564 = vpop.permute.xlu0 %1563
    %1567 = vset.pattern.permute.xlu0 0
    %1568 = vperm.xlu0 %1567, %v1554
    %v1569 = vpop.permute.xlu0 %1568
    %1572 = vset.pattern.permute.xlu0 0
    %1573 = vperm.xlu0 %1572, %v1555
    %v1574 = vpop.permute.xlu0 %1573
    %1576 = vmatprep.subr.mxu0 0.0
    %1577 = vmatpush1.msra.mxu0 %v1544
    %1578 = vmatprep.subr.mxu0 0.0
    %1579 = vmatpush1.msra.mxu0 %v1545
    %1580 = vmatprep.subr.mxu0 0.0
    %1581 = vmatpush1.msra.mxu0 %v1546
    %1582 = vmatprep.subr.mxu0 0.0
    %1583 = vmatpush1.msra.mxu0 %v1547
    %1584 = vmatprep.subr.mxu0 0.0
    %1585 = vmatpush1.msra.mxu0 %v1548
    %1586 = vmatprep.subr.mxu0 0.0
    %1587 = vmatpush1.msra.mxu0 %v1549
    %1588 = vmatprep.subr.mxu0 0.0
    %1589 = vmatpush1.msra.mxu0 %v1550
    %1590 = vmatprep.subr.mxu0 0.0
    %1591 = vmatpush1.msra.mxu0 %v1551
    %1592 = vmatprep.subr.mxu0 0.0
    %1593 = vmatpush1.msra.mxu0 0.0
    %1594 = vmatprep.subr.mxu0 0.0
    %1595 = vmatpush1.msra.mxu0 0.0
    %1596 = vmatprep.subr.mxu0 0.0
    %1597 = vmatpush1.msra.mxu0 0.0
    %1598 = vmatprep.subr.mxu0 0.0
    %1599 = vmatpush1.msra.mxu0 0.0
    %1600 = vmatprep.subr.mxu0 0.0
    %1601 = vmatpush1.msra.mxu0 0.0
    %1602 = vmatprep.subr.mxu0 0.0
    %1603 = vmatpush1.msra.mxu0 0.0
    %1604 = vmatprep.subr.mxu0 0.0
    %1605 = vmatpush1.msra.mxu0 0.0
    %1606 = vmatprep.subr.mxu0 0.0
    %1607 = vmatpush1.msra.mxu0 0.0
    %1608 = vmatprep.subr.mxu0 0.0
    %1609 = vmatpush1.msra.mxu0 0.0
    %1610 = vmatprep.subr.mxu0 0.0
    %1611 = vmatpush1.msra.mxu0 0.0
    %1612 = vmatprep.subr.mxu0 0.0
    %1613 = vmatpush1.msra.mxu0 0.0
    %1614 = vmatprep.subr.mxu0 0.0
    %1615 = vmatpush1.msra.mxu0 0.0
    %1616 = vmatprep.subr.mxu0 0.0
    %1617 = vmatpush1.msra.mxu0 0.0
    %1618 = vmatprep.subr.mxu0 0.0
    %1619 = vmatpush1.msra.mxu0 0.0
    %1620 = vmatprep.subr.mxu0 0.0
    %1621 = vmatpush1.msra.mxu0 0.0
    %1622 = vmatprep.subr.mxu0 0.0
    %1623 = vmatpush1.msra.mxu0 0.0
    %1624 = vmatprep.subr.mxu0 0.0
    %1625 = vmatpush1.msra.mxu0 0.0
    %1626 = vmatprep.subr.mxu0 0.0
    %1627 = vmatpush1.msra.mxu0 0.0
    %1628 = vmatprep.subr.mxu0 0.0
    %1629 = vmatpush1.msra.mxu0 0.0
    %1630 = vmatprep.subr.mxu0 0.0
    %1631 = vmatpush1.msra.mxu0 0.0
    %1632 = vmatprep.subr.mxu0 0.0
    %1633 = vmatpush1.msra.mxu0 0.0
    %1634 = vmatprep.subr.mxu0 0.0
    %1635 = vmatpush1.msra.mxu0 0.0
    %1636 = vmatprep.subr.mxu0 0.0
    %1637 = vmatpush1.msra.mxu0 0.0
    %1638 = vmatprep.subr.mxu0 0.0
    %1639 = vmatpush1.msra.mxu0 0.0
    %1640 = vmatprep.mubr.f32.mxu0 0.0
    %1641 = vmatmul.mubr.f32.gmra.mrb[0].mxu0 %v720
    %v1642 = vpop.f32.mrb[0].mxu0
    %v1643 = vadd.f32 %v1559, %v1642
    %v1644 = vpop.f32.mrb[0].mxu0
    %1645 = vmatprep.mubr.f32.mxu0 0.0
    %1646 = vmatmul.mubr.f32.gmra.mrb[0].mxu0 %v723
    %v1647 = vpop.f32.mrb[0].mxu0
    %v1648 = vadd.f32 %v1564, %v1647
    %v1649 = vpop.f32.mrb[0].mxu0
    %1650 = vmatprep.mubr.f32.mxu0 0.0
    %1651 = vmatmul.mubr.f32.gmra.mrb[0].mxu0 %v726
    %v1652 = vpop.f32.mrb[0].mxu0
    %v1653 = vadd.f32 %v1569, %v1652
    %v1654 = vpop.f32.mrb[0].mxu0
    %1655 = vmatprep.mubr.f32.mxu0 0.0
    %1656 = vmatmul.mubr.f32.gmra.mrb[0].mxu0 %v729
    %v1657 = vpop.f32.mrb[0].mxu0
    %v1658 = vadd.f32 %v1574, %v1657
    %v1659 = vpop.f32.mrb[0].mxu0
    %1660 = vdwg.mxu0
    %v1661 = vld [vmem:[%s319] sm:$0xff]
    %v1662 = vld [vmem:[%s319 + $0x8] sm:$0xff]
    %v1663 = vld [vmem:[%s319 + $0x10] sm:$0xff]
    %v1664 = vld [vmem:[%s319 + $0x18] sm:$0xff]
    %v1665 = vadd.f32 %v1661, %v1643
    %v1666 = vadd.f32 %v1662, %v1648
    %v1667 = vadd.f32 %v1663, %v1653
    %v1668 = vadd.f32 %v1664, %v1658
    %v1669 = vsel %vm461, %v1665, 0.0
    %v1670 = vsel %vm461, %v1666, 0.0
    %v1671 = vadd.f32 %v1669, %v1670
    %v1672 = vsel %vm461, %v1667, 0.0
    %v1673 = vadd.f32 %v1671, %v1672
    %v1674 = vsel %vm461, %v1668, 0.0
    %v1675 = vadd.f32 %v1673, %v1674
    %v1676 = vrot.slane %v1675, 4
    %v1677 = vadd.f32 %v1675, %v1676
    %v1678 = vrot.slane %v1677, 2
    %v1679 = vadd.f32 %v1677, %v1678
    %v1680 = vrot.slane %v1679, 1
    %v1681 = vadd.f32 %v1679, %v1680
    %v1682 = vmul.f32 %v1681, 0.03125
    %v1683 = vsub.f32 %v1665, %v1682
    %v1684 = vsub.f32 %v1666, %v1682
    %v1685 = vsub.f32 %v1667, %v1682
    %v1686 = vsub.f32 %v1668, %v1682
    %v1687 = vmul.f32 %v1683, %v1683
    %v1688 = vmul.f32 %v1684, %v1684
    %v1689 = vmul.f32 %v1685, %v1685
    %v1690 = vmul.f32 %v1686, %v1686
    %v1691 = vsel %vm461, %v1687, 0.0
    %v1692 = vsel %vm461, %v1688, 0.0
    %v1693 = vadd.f32 %v1691, %v1692
    %v1694 = vsel %vm461, %v1689, 0.0
    %v1695 = vadd.f32 %v1693, %v1694
    %v1696 = vsel %vm461, %v1690, 0.0
    %v1697 = vadd.f32 %v1695, %v1696
    %v1698 = vrot.slane %v1697, 4
    %v1699 = vadd.f32 %v1697, %v1698
    %v1700 = vrot.slane %v1699, 2
    %v1701 = vadd.f32 %v1699, %v1700
    %v1702 = vrot.slane %v1701, 1
    %v1703 = vadd.f32 %v1701, %v1702
    %v1704 = vmul.f32 %v1703, 0.03125
    %v1705 = vadd.f32 %v1704, 1e-05
    %v1706 = vrsqrt.pop %v1705
    %v1707 = vmul.f32 %v1683, %v1706
    %v1708 = vmul.f32 %v1684, %v1706
    %v1709 = vmul.f32 %v1685, %v1706
    %v1710 = vmul.f32 %v1686, %v1706
    %v1711 = vld [vmem:[%s7] sm:$0xff]
    %v1712 = vld [vmem:[%s7 + $0x8] sm:$0xff]
    %v1713 = vld [vmem:[%s7 + $0x10] sm:$0xff]
    %v1714 = vld [vmem:[%s7 + $0x18] sm:$0xff]
    %1716 = vset.pattern.permute.xlu0 0
    %1717 = vperm.xlu0 %1716, %v1711
    %v1718 = vpop.permute.xlu0 %1717
    %1721 = vset.pattern.permute.xlu0 0
    %1722 = vperm.xlu0 %1721, %v1712
    %v1723 = vpop.permute.xlu0 %1722
    %1726 = vset.pattern.permute.xlu0 0
    %1727 = vperm.xlu0 %1726, %v1713
    %v1728 = vpop.permute.xlu0 %1727
    %1731 = vset.pattern.permute.xlu0 0
    %1732 = vperm.xlu0 %1731, %v1714
    %v1733 = vpop.permute.xlu0 %1732
    %v1735 = vmul.f32 %v1707, %v1718
    %v1736 = vmul.f32 %v1708, %v1723
    %v1737 = vmul.f32 %v1709, %v1728
    %v1738 = vmul.f32 %v1710, %v1733
    %v1739 = vld [vmem:[%s8] sm:$0xff]
    %v1740 = vld [vmem:[%s8 + $0x8] sm:$0xff]
    %v1741 = vld [vmem:[%s8 + $0x10] sm:$0xff]
    %v1742 = vld [vmem:[%s8 + $0x18] sm:$0xff]
    %1744 = vset.pattern.permute.xlu0 0
    %1745 = vperm.xlu0 %1744, %v1739
    %v1746 = vpop.permute.xlu0 %1745
    %1749 = vset.pattern.permute.xlu0 0
    %1750 = vperm.xlu0 %1749, %v1740
    %v1751 = vpop.permute.xlu0 %1750
    %1754 = vset.pattern.permute.xlu0 0
    %1755 = vperm.xlu0 %1754, %v1741
    %v1756 = vpop.permute.xlu0 %1755
    %1759 = vset.pattern.permute.xlu0 0
    %1760 = vperm.xlu0 %1759, %v1742
    %v1761 = vpop.permute.xlu0 %1760
    %v1763 = vadd.f32 %v1735, %v1746
    %v1764 = vadd.f32 %v1736, %v1751
    %v1765 = vadd.f32 %v1737, %v1756
    %v1766 = vadd.f32 %v1738, %v1761
    %v1767 = vld [vmem:[%s9] sm:$0xff]
    %v1768 = vld [vmem:[%s9 + $0x8] sm:$0xff]
    %v1769 = vld [vmem:[%s9 + $0x10] sm:$0xff]
    %v1770 = vld [vmem:[%s9 + $0x18] sm:$0xff]
    %v1771 = vld [vmem:[%s9 + $0x20] sm:$0xff]
    %v1772 = vld [vmem:[%s9 + $0x28] sm:$0xff]
    %v1773 = vld [vmem:[%s9 + $0x30] sm:$0xff]
    %v1774 = vld [vmem:[%s9 + $0x38] sm:$0xff]
    %v1775 = vld [vmem:[%s10] sm:$0xff]
    %v1776 = vld [vmem:[%s10 + $0x8] sm:$0xff]
    %v1777 = vld [vmem:[%s10 + $0x10] sm:$0xff]
    %v1778 = vld [vmem:[%s10 + $0x18] sm:$0xff]
    %v1779 = vld [vmem:[%s10 + $0x20] sm:$0xff]
    %v1780 = vld [vmem:[%s10 + $0x28] sm:$0xff]
    %v1781 = vld [vmem:[%s10 + $0x30] sm:$0xff]
    %v1782 = vld [vmem:[%s10 + $0x38] sm:$0xff]
    %1784 = vset.pattern.permute.xlu0 0
    %1785 = vperm.xlu0 %1784, %v1775
    %v1786 = vpop.permute.xlu0 %1785
    %1789 = vset.pattern.permute.xlu0 0
    %1790 = vperm.xlu0 %1789, %v1776
    %v1791 = vpop.permute.xlu0 %1790
    %1794 = vset.pattern.permute.xlu0 0
    %1795 = vperm.xlu0 %1794, %v1777
    %v1796 = vpop.permute.xlu0 %1795
    %1799 = vset.pattern.permute.xlu0 0
    %1800 = vperm.xlu0 %1799, %v1778
    %v1801 = vpop.permute.xlu0 %1800
    %1804 = vset.pattern.permute.xlu0 0
    %1805 = vperm.xlu0 %1804, %v1779
    %v1806 = vpop.permute.xlu0 %1805
    %1809 = vset.pattern.permute.xlu0 0
    %1810 = vperm.xlu0 %1809, %v1780
    %v1811 = vpop.permute.xlu0 %1810
    %1814 = vset.pattern.permute.xlu0 0
    %1815 = vperm.xlu0 %1814, %v1781
    %v1816 = vpop.permute.xlu0 %1815
    %1819 = vset.pattern.permute.xlu0 0
    %1820 = vperm.xlu0 %1819, %v1782
    %v1821 = vpop.permute.xlu0 %1820
    %v1824 = vsel %vm153, %v1767, 0
    %v1827 = vsel %vm153, %v1768, 0
    %v1830 = vsel %vm153, %v1769, 0
    %v1833 = vsel %vm153, %v1770, 0
    %v1836 = vsel %vm153, %v1771, 0
    %v1839 = vsel %vm153, %v1772, 0
    %v1842 = vsel %vm153, %v1773, 0
    %v1845 = vsel %vm153, %v1774, 0
    %1847 = vmatprep.subr.mxu0 0.0
    %1848 = vmatpush1.msra.mxu0 %v1763
    %1849 = vmatprep.subr.mxu0 0.0
    %1850 = vmatpush1.msra.mxu0 %v1764
    %1851 = vmatprep.subr.mxu0 0.0
    %1852 = vmatpush1.msra.mxu0 %v1765
    %1853 = vmatprep.subr.mxu0 0.0
    %1854 = vmatpush1.msra.mxu0 %v1766
    %1855 = vmatprep.subr.mxu0 0.0
    %1856 = vmatpush1.msra.mxu0 0.0
    %1857 = vmatprep.subr.mxu0 0.0
    %1858 = vmatpush1.msra.mxu0 0.0
    %1859 = vmatprep.subr.mxu0 0.0
    %1860 = vmatpush1.msra.mxu0 0.0
    %1861 = vmatprep.subr.mxu0 0.0
    %1862 = vmatpush1.msra.mxu0 0.0
    %1863 = vmatprep.subr.mxu0 0.0
    %1864 = vmatpush1.msra.mxu0 0.0
    %1865 = vmatprep.subr.mxu0 0.0
    %1866 = vmatpush1.msra.mxu0 0.0
    %1867 = vmatprep.subr.mxu0 0.0
    %1868 = vmatpush1.msra.mxu0 0.0
    %1869 = vmatprep.subr.mxu0 0.0
    %1870 = vmatpush1.msra.mxu0 0.0
    %1871 = vmatprep.subr.mxu0 0.0
    %1872 = vmatpush1.msra.mxu0 0.0
    %1873 = vmatprep.subr.mxu0 0.0
    %1874 = vmatpush1.msra.mxu0 0.0
    %1875 = vmatprep.subr.mxu0 0.0
    %1876 = vmatpush1.msra.mxu0 0.0
    %1877 = vmatprep.subr.mxu0 0.0
    %1878 = vmatpush1.msra.mxu0 0.0
    %1879 = vmatprep.subr.mxu0 0.0
    %1880 = vmatpush1.msra.mxu0 0.0
    %1881 = vmatprep.subr.mxu0 0.0
    %1882 = vmatpush1.msra.mxu0 0.0
    %1883 = vmatprep.subr.mxu0 0.0
    %1884 = vmatpush1.msra.mxu0 0.0
    %1885 = vmatprep.subr.mxu0 0.0
    %1886 = vmatpush1.msra.mxu0 0.0
    %1887 = vmatprep.subr.mxu0 0.0
    %1888 = vmatpush1.msra.mxu0 0.0
    %1889 = vmatprep.subr.mxu0 0.0
    %1890 = vmatpush1.msra.mxu0 0.0
    %1891 = vmatprep.subr.mxu0 0.0
    %1892 = vmatpush1.msra.mxu0 0.0
    %1893 = vmatprep.subr.mxu0 0.0
    %1894 = vmatpush1.msra.mxu0 0.0
    %1895 = vmatprep.subr.mxu0 0.0
    %1896 = vmatpush1.msra.mxu0 0.0
    %1897 = vmatprep.subr.mxu0 0.0
    %1898 = vmatpush1.msra.mxu0 0.0
    %1899 = vmatprep.subr.mxu0 0.0
    %1900 = vmatpush1.msra.mxu0 0.0
    %1901 = vmatprep.subr.mxu0 0.0
    %1902 = vmatpush1.msra.mxu0 0.0
    %1903 = vmatprep.subr.mxu0 0.0
    %1904 = vmatpush1.msra.mxu0 0.0
    %1905 = vmatprep.subr.mxu0 0.0
    %1906 = vmatpush1.msra.mxu0 0.0
    %1907 = vmatprep.subr.mxu0 0.0
    %1908 = vmatpush1.msra.mxu0 0.0
    %1909 = vmatprep.subr.mxu0 0.0
    %1910 = vmatpush1.msra.mxu0 0.0
    %1911 = vmatprep.mubr.f32.mxu0 0.0
    %1912 = vmatmul.mubr.f32.gmra.mrb[0].mxu0 %v1824
    %v1913 = vpop.f32.mrb[0].mxu0
    %v1914 = vadd.f32 %v1786, %v1913
    %v1915 = vpop.f32.mrb[0].mxu0
    %1916 = vmatprep.mubr.f32.mxu0 0.0
    %1917 = vmatmul.mubr.f32.gmra.mrb[0].mxu0 %v1827
    %v1918 = vpop.f32.mrb[0].mxu0
    %v1919 = vadd.f32 %v1791, %v1918
    %v1920 = vpop.f32.mrb[0].mxu0
    %1921 = vmatprep.mubr.f32.mxu0 0.0
    %1922 = vmatmul.mubr.f32.gmra.mrb[0].mxu0 %v1830
    %v1923 = vpop.f32.mrb[0].mxu0
    %v1924 = vadd.f32 %v1796, %v1923
    %v1925 = vpop.f32.mrb[0].mxu0
    %1926 = vmatprep.mubr.f32.mxu0 0.0
    %1927 = vmatmul.mubr.f32.gmra.mrb[0].mxu0 %v1833
    %v1928 = vpop.f32.mrb[0].mxu0
    %v1929 = vadd.f32 %v1801, %v1928
    %v1930 = vpop.f32.mrb[0].mxu0
    %1931 = vmatprep.mubr.f32.mxu0 0.0
    %1932 = vmatmul.mubr.f32.gmra.mrb[0].mxu0 %v1836
    %v1933 = vpop.f32.mrb[0].mxu0
    %v1934 = vadd.f32 %v1806, %v1933
    %v1935 = vpop.f32.mrb[0].mxu0
    %1936 = vmatprep.mubr.f32.mxu0 0.0
    %1937 = vmatmul.mubr.f32.gmra.mrb[0].mxu0 %v1839
    %v1938 = vpop.f32.mrb[0].mxu0
    %v1939 = vadd.f32 %v1811, %v1938
    %v1940 = vpop.f32.mrb[0].mxu0
    %1941 = vmatprep.mubr.f32.mxu0 0.0
    %1942 = vmatmul.mubr.f32.gmra.mrb[0].mxu0 %v1842
    %v1943 = vpop.f32.mrb[0].mxu0
    %v1944 = vadd.f32 %v1816, %v1943
    %v1945 = vpop.f32.mrb[0].mxu0
    %1946 = vmatprep.mubr.f32.mxu0 0.0
    %1947 = vmatmul.mubr.f32.gmra.mrb[0].mxu0 %v1845
    %v1948 = vpop.f32.mrb[0].mxu0
    %v1949 = vadd.f32 %v1821, %v1948
    %v1950 = vpop.f32.mrb[0].mxu0
    %1951 = vdwg.mxu0
    %v1952 = vmax.f32 %v1914, 0.0
    %v1953 = vmax.f32 %v1919, 0.0
    %v1954 = vmax.f32 %v1924, 0.0
    %v1955 = vmax.f32 %v1929, 0.0
    %v1956 = vmax.f32 %v1934, 0.0
    %v1957 = vmax.f32 %v1939, 0.0
    %v1958 = vmax.f32 %v1944, 0.0
    %v1959 = vmax.f32 %v1949, 0.0
    %v1960 = vld [vmem:[%s11] sm:$0xff]
    %v1961 = vld [vmem:[%s11 + $0x8] sm:$0xff]
    %v1962 = vld [vmem:[%s11 + $0x10] sm:$0xff]
    %v1963 = vld [vmem:[%s11 + $0x18] sm:$0xff]
    %v1964 = vld [vmem:[%s12] sm:$0xff]
    %v1965 = vld [vmem:[%s12 + $0x8] sm:$0xff]
    %v1966 = vld [vmem:[%s12 + $0x10] sm:$0xff]
    %v1967 = vld [vmem:[%s12 + $0x18] sm:$0xff]
    %1969 = vset.pattern.permute.xlu0 0
    %1970 = vperm.xlu0 %1969, %v1964
    %v1971 = vpop.permute.xlu0 %1970
    %1974 = vset.pattern.permute.xlu0 0
    %1975 = vperm.xlu0 %1974, %v1965
    %v1976 = vpop.permute.xlu0 %1975
    %1979 = vset.pattern.permute.xlu0 0
    %1980 = vperm.xlu0 %1979, %v1966
    %v1981 = vpop.permute.xlu0 %1980
    %1984 = vset.pattern.permute.xlu0 0
    %1985 = vperm.xlu0 %1984, %v1967
    %v1986 = vpop.permute.xlu0 %1985
    %v1989 = vsel %vm461, %v1960, 0
    %v1992 = vsel %vm461, %v1961, 0
    %v1995 = vsel %vm461, %v1962, 0
    %v1998 = vsel %vm461, %v1963, 0
    %2000 = vmatprep.subr.mxu0 0.0
    %2001 = vmatpush1.msra.mxu0 %v1952
    %2002 = vmatprep.subr.mxu0 0.0
    %2003 = vmatpush1.msra.mxu0 %v1953
    %2004 = vmatprep.subr.mxu0 0.0
    %2005 = vmatpush1.msra.mxu0 %v1954
    %2006 = vmatprep.subr.mxu0 0.0
    %2007 = vmatpush1.msra.mxu0 %v1955
    %2008 = vmatprep.subr.mxu0 0.0
    %2009 = vmatpush1.msra.mxu0 %v1956
    %2010 = vmatprep.subr.mxu0 0.0
    %2011 = vmatpush1.msra.mxu0 %v1957
    %2012 = vmatprep.subr.mxu0 0.0
    %2013 = vmatpush1.msra.mxu0 %v1958
    %2014 = vmatprep.subr.mxu0 0.0
    %2015 = vmatpush1.msra.mxu0 %v1959
    %2016 = vmatprep.subr.mxu0 0.0
    %2017 = vmatpush1.msra.mxu0 0.0
    %2018 = vmatprep.subr.mxu0 0.0
    %2019 = vmatpush1.msra.mxu0 0.0
    %2020 = vmatprep.subr.mxu0 0.0
    %2021 = vmatpush1.msra.mxu0 0.0
    %2022 = vmatprep.subr.mxu0 0.0
    %2023 = vmatpush1.msra.mxu0 0.0
    %2024 = vmatprep.subr.mxu0 0.0
    %2025 = vmatpush1.msra.mxu0 0.0
    %2026 = vmatprep.subr.mxu0 0.0
    %2027 = vmatpush1.msra.mxu0 0.0
    %2028 = vmatprep.subr.mxu0 0.0
    %2029 = vmatpush1.msra.mxu0 0.0
    %2030 = vmatprep.subr.mxu0 0.0
    %2031 = vmatpush1.msra.mxu0 0.0
    %2032 = vmatprep.subr.mxu0 0.0
    %2033 = vmatpush1.msra.mxu0 0.0
    %2034 = vmatprep.subr.mxu0 0.0
    %2035 = vmatpush1.msra.mxu0 0.0
    %2036 = vmatprep.subr.mxu0 0.0
    %2037 = vmatpush1.msra.mxu0 0.0
    %2038 = vmatprep.subr.mxu0 0.0
    %2039 = vmatpush1.msra.mxu0 0.0
    %2040 = vmatprep.subr.mxu0 0.0
    %2041 = vmatpush1.msra.mxu0 0.0
    %2042 = vmatprep.subr.mxu0 0.0
    %2043 = vmatpush1.msra.mxu0 0.0
    %2044 = vmatprep.subr.mxu0 0.0
    %2045 = vmatpush1.msra.mxu0 0.0
    %2046 = vmatprep.subr.mxu0 0.0
    %2047 = vmatpush1.msra.mxu0 0.0
    %2048 = vmatprep.subr.mxu0 0.0
    %2049 = vmatpush1.msra.mxu0 0.0
    %2050 = vmatprep.subr.mxu0 0.0
    %2051 = vmatpush1.msra.mxu0 0.0
    %2052 = vmatprep.subr.mxu0 0.0
    %2053 = vmatpush1.msra.mxu0 0.0
    %2054 = vmatprep.subr.mxu0 0.0
    %2055 = vmatpush1.msra.mxu0 0.0
    %2056 = vmatprep.subr.mxu0 0.0
    %2057 = vmatpush1.msra.mxu0 0.0
    %2058 = vmatprep.subr.mxu0 0.0
    %2059 = vmatpush1.msra.mxu0 0.0
    %2060 = vmatprep.subr.mxu0 0.0
    %2061 = vmatpush1.msra.mxu0 0.0
    %2062 = vmatprep.subr.mxu0 0.0
    %2063 = vmatpush1.msra.mxu0 0.0
    %2064 = vmatprep.mubr.f32.mxu0 0.0
    %2065 = vmatmul.mubr.f32.gmra.mrb[0].mxu0 %v1989
    %v2066 = vpop.f32.mrb[0].mxu0
    %v2067 = vadd.f32 %v1971, %v2066
    %v2068 = vpop.f32.mrb[0].mxu0
    %2069 = vmatprep.mubr.f32.mxu0 0.0
    %2070 = vmatmul.mubr.f32.gmra.mrb[0].mxu0 %v1992
    %v2071 = vpop.f32.mrb[0].mxu0
    %v2072 = vadd.f32 %v1976, %v2071
    %v2073 = vpop.f32.mrb[0].mxu0
    %2074 = vmatprep.mubr.f32.mxu0 0.0
    %2075 = vmatmul.mubr.f32.gmra.mrb[0].mxu0 %v1995
    %v2076 = vpop.f32.mrb[0].mxu0
    %v2077 = vadd.f32 %v1981, %v2076
    %v2078 = vpop.f32.mrb[0].mxu0
    %2079 = vmatprep.mubr.f32.mxu0 0.0
    %2080 = vmatmul.mubr.f32.gmra.mrb[0].mxu0 %v1998
    %v2081 = vpop.f32.mrb[0].mxu0
    %v2082 = vadd.f32 %v1986, %v2081
    %v2083 = vpop.f32.mrb[0].mxu0
    %2084 = vdwg.mxu0
    %v2085 = vadd.f32 %v1763, %v2067
    %v2086 = vadd.f32 %v1764, %v2072
    %v2087 = vadd.f32 %v1765, %v2077
    %v2088 = vadd.f32 %v1766, %v2082
    %v2089 = vsel %vm461, %v2085, 0.0
    %v2090 = vsel %vm461, %v2086, 0.0
    %v2091 = vadd.f32 %v2089, %v2090
    %v2092 = vsel %vm461, %v2087, 0.0
    %v2093 = vadd.f32 %v2091, %v2092
    %v2094 = vsel %vm461, %v2088, 0.0
    %v2095 = vadd.f32 %v2093, %v2094
    %v2096 = vrot.slane %v2095, 4
    %v2097 = vadd.f32 %v2095, %v2096
    %v2098 = vrot.slane %v2097, 2
    %v2099 = vadd.f32 %v2097, %v2098
    %v2100 = vrot.slane %v2099, 1
    %v2101 = vadd.f32 %v2099, %v2100
    %v2102 = vmul.f32 %v2101, 0.03125
    %v2103 = vsub.f32 %v2085, %v2102
    %v2104 = vsub.f32 %v2086, %v2102
    %v2105 = vsub.f32 %v2087, %v2102
    %v2106 = vsub.f32 %v2088, %v2102
    %v2107 = vmul.f32 %v2103, %v2103
    %v2108 = vmul.f32 %v2104, %v2104
    %v2109 = vmul.f32 %v2105, %v2105
    %v2110 = vmul.f32 %v2106, %v2106
    %v2111 = vsel %vm461, %v2107, 0.0
    %v2112 = vsel %vm461, %v2108, 0.0
    %v2113 = vadd.f32 %v2111, %v2112
    %v2114 = vsel %vm461, %v2109, 0.0
    %v2115 = vadd.f32 %v2113, %v2114
    %v2116 = vsel %vm461, %v2110, 0.0
    %v2117 = vadd.f32 %v2115, %v2116
    %v2118 = vrot.slane %v2117, 4
    %v2119 = vadd.f32 %v2117, %v2118
    %v2120 = vrot.slane %v2119, 2
    %v2121 = vadd.f32 %v2119, %v2120
    %v2122 = vrot.slane %v2121, 1
    %v2123 = vadd.f32 %v2121, %v2122
    %v2124 = vmul.f32 %v2123, 0.03125
    %v2125 = vadd.f32 %v2124, 1e-05
    %v2126 = vrsqrt.pop %v2125
    %v2127 = vmul.f32 %v2103, %v2126
    %v2128 = vmul.f32 %v2104, %v2126
    %v2129 = vmul.f32 %v2105, %v2126
    %v2130 = vmul.f32 %v2106, %v2126
    %v2131 = vld [vmem:[%s13] sm:$0xff]
    %v2132 = vld [vmem:[%s13 + $0x8] sm:$0xff]
    %v2133 = vld [vmem:[%s13 + $0x10] sm:$0xff]
    %v2134 = vld [vmem:[%s13 + $0x18] sm:$0xff]
    %2136 = vset.pattern.permute.xlu0 0
    %2137 = vperm.xlu0 %2136, %v2131
    %v2138 = vpop.permute.xlu0 %2137
    %2141 = vset.pattern.permute.xlu0 0
    %2142 = vperm.xlu0 %2141, %v2132
    %v2143 = vpop.permute.xlu0 %2142
    %2146 = vset.pattern.permute.xlu0 0
    %2147 = vperm.xlu0 %2146, %v2133
    %v2148 = vpop.permute.xlu0 %2147
    %2151 = vset.pattern.permute.xlu0 0
    %2152 = vperm.xlu0 %2151, %v2134
    %v2153 = vpop.permute.xlu0 %2152
    %v2155 = vmul.f32 %v2127, %v2138
    %v2156 = vmul.f32 %v2128, %v2143
    %v2157 = vmul.f32 %v2129, %v2148
    %v2158 = vmul.f32 %v2130, %v2153
    %v2159 = vld [vmem:[%s14] sm:$0xff]
    %v2160 = vld [vmem:[%s14 + $0x8] sm:$0xff]
    %v2161 = vld [vmem:[%s14 + $0x10] sm:$0xff]
    %v2162 = vld [vmem:[%s14 + $0x18] sm:$0xff]
    %2164 = vset.pattern.permute.xlu0 0
    %2165 = vperm.xlu0 %2164, %v2159
    %v2166 = vpop.permute.xlu0 %2165
    %2169 = vset.pattern.permute.xlu0 0
    %2170 = vperm.xlu0 %2169, %v2160
    %v2171 = vpop.permute.xlu0 %2170
    %2174 = vset.pattern.permute.xlu0 0
    %2175 = vperm.xlu0 %2174, %v2161
    %v2176 = vpop.permute.xlu0 %2175
    %2179 = vset.pattern.permute.xlu0 0
    %2180 = vperm.xlu0 %2179, %v2162
    %v2181 = vpop.permute.xlu0 %2180
    %v2183 = vadd.f32 %v2155, %v2166
    %v2184 = vadd.f32 %v2156, %v2171
    %v2185 = vadd.f32 %v2157, %v2176
    %v2186 = vadd.f32 %v2158, %v2181
    %s2187 = scalar_lea.vmem [#allocation2], 32
    %2188 = vst.msk [vmem:[%s2187] sm:$0xff] %vm461, %v2183
    %2189 = vst.msk [vmem:[%s2187 + $0x8] sm:$0xff] %vm461, %v2184
    %2190 = vst.msk [vmem:[%s2187 + $0x10] sm:$0xff] %vm461, %v2185
    %2191 = vst.msk [vmem:[%s2187 + $0x18] sm:$0xff] %vm461, %v2186
    // Predicated region
    $region62: #{tpu_custom_call.1} parent=1 // pred_check
      _
    $region63: #{tpu_custom_call.1} parent=1 // pred_check_branch
      %2193 = sbr.rel (0) target = $region65
    $region64: #{tpu_custom_call.1} parent=1 // pred_region
      %s2195 = ssub.s32 1024, 1024
      %2196 = vsyncadd [#allocation3], %s2195
      %s2197 = sshll.u32 [#allocation2], 4
      %s2198 = int_to_ptr.vmem [resolvable:$true] %s2197
      %2203 = dma.vmem_to_hbm [thread:$0]  %s2198, 1024, %s15, [#allocation3], 128, 128, 8
    $region65: #{tpu_custom_call.1} parent=1 // pred_fallthru
      _
    // Predicated region
    $region66: #{tpu_custom_call.1} parent=1 // pred_check
      _
    $region67: #{tpu_custom_call.1} parent=1 // pred_check_branch
      %2205 = sbr.rel (0) target = $region69
    $region68: #{tpu_custom_call.1} parent=1 // pred_region
      %2206 = dma.done [#allocation3], 1024
    $region69: #{tpu_custom_call.1} parent=1 // pred_fallthru
      _
    %2207 = vsyncpa [#allocation3], 1

</llo_original>
